<compile_context>
chip_gen: v6e
topology: v6e:2x2x1
jax: 0.10.0
libtpu: 0.0.40
codegen_flags: <defaults>
</compile_context>

<pallas_src>
import functools

import numpy as np
import jax
import jax.numpy as jnp
from jax.experimental import pallas as pl
from jax.experimental.pallas import tpu as pltpu


# ----------------------------------------------------------------------------
# Fused Pallas kernel: self-correlation + AddNorm(GroupNorm) + 3x3 conv + tanh
# ----------------------------------------------------------------------------
def _ssc_fused_kernel(x_ref, params_ref, w_ref, out_ref, norm_ref, cols_ref,
                      *, H, W, C_in, C_out, TB):
    """One grid step = TB frames, batch folded into the lane axis.

    x_ref:      (C_in, TB*HW)   f32  input frames (channels on sublanes, b*HW+n on lanes)
    params_ref: (Cpad, 3)       f32  packed [gamma | beta | conv bias] columns
    w_ref:      (C_out, 9*C_in) bf16 conv weight, tap-major: [:, k*C_in + ci], k=(dy+1)*3+(dx+1)
    out_ref:    (C_out, TB*HW)  f32  tanh(conv(selfcorr_norm))
    norm_ref:   (C_in, TB*HW)   f32  normalized self-correlation map (second module output)
    cols_ref:   (9*C_in, TB*HW) bf16 VMEM scratch: in-VMEM im2col of norm_ref
    """
    HW = H * W
    TBHW = TB * HW
    inv_hw = 1.0 / HW

    x = x_ref[...]                                          # (C_in, TBHW) f32
    params = params_ref[...]
    gamma = params[:C_in, 0:1]                              # (C_in, 1)
    beta = params[:C_in, 1:2]                               # (C_in, 1)
    bias = params[:C_out, 2:3]                              # (C_out, 1)

    # ---- get_corr pieces shared by all frames (per-pixel, no cross-frame mixing) ----
    m = jnp.max(x, axis=0, keepdims=True)
    e = jnp.exp(x - m)
    s = e / jnp.sum(e, axis=0, keepdims=True)               # softmax over channels
    nx = jnp.sqrt(jnp.sum(x * x, axis=0, keepdims=True))    # (1, TBHW) = ||X[:, n]||

    # ---- per-frame correlation + AddNorm (GroupNorm(C, C)); dropout = identity -------
    for b in range(TB):                                     # static unroll, TB is small
        sl = slice(b * HW, (b + 1) * HW)                    # lane-aligned (HW % 128 == 0)
        xb = x[:, sl]
        sb = s[:, sl]
        # pt[j, i] = sum_n softmax(X)[j, n] * X[i, n] / HW  ==  P[i, j] of the reference.
        # HIGHEST precision: this tiny (C x C) dot feeds the normalization.
        pt = jax.lax.dot_general(
            sb, xb, (((1,), (1,)), ((), ())),
            preferred_element_type=jnp.float32,
            precision=jax.lax.Precision.HIGHEST) * inv_hw
        np_col = jnp.sqrt(jnp.sum(pt * pt, axis=1, keepdims=True))   # (C_in,1) = ||P[:, j]||
        z = xb + np_col * nx[:, sl]                         # X + corr (VPU outer product)
        # one-pass GroupNorm(C, C): per-channel mean/var over HW
        s1 = jnp.sum(z, axis=1, keepdims=True) * inv_hw
        s2 = jnp.sum(z * z, axis=1, keepdims=True) * inv_hw
        var = jnp.maximum(s2 - s1 * s1, 0.0)
        zn = (z - s1) * jax.lax.rsqrt(var + 1e-5) * gamma + beta
        norm_ref[:, sl] = zn.astype(norm_ref.dtype)

    # ---- 3x3 conv (padding=1) + tanh: in-VMEM im2col via lane rolls + iota masks -----
    zn_full = norm_ref[...]                                 # (C_in, TBHW) f32
    lane = jax.lax.broadcasted_iota(jnp.int32, (1, TBHW), 1)
    col = lane % W                                          # column inside a frame
    r = lane % HW                                           # flat pixel index inside a frame
    row_ok = {-1: r >= W, 0: None, 1: r < (HW - W)}
    col_ok = {-1: col >= 1, 0: None, 1: col < (W - 1)}

    k = 0
    for dy in (-1, 0, 1):
        for dx in (-1, 0, 1):
            off = dy * W + dx                               # flattened input offset
            # tap[:, n] = zn[:, n + off]; wrap / cross-frame reads only at masked positions.
            tap = zn_full if off == 0 else pltpu.roll(zn_full, (-off) % TBHW, axis=1)
            valid = None
            if row_ok[dy] is not None:
                valid = row_ok[dy]
            if col_ok[dx] is not None:
                valid = col_ok[dx] if valid is None else (valid & col_ok[dx])
            if valid is not None:
                tap = jnp.where(valid, tap, 0.0)            # zero padding of the conv
            cols_ref[k * C_in:(k + 1) * C_in, :] = tap.astype(jnp.bfloat16)
            k += 1

    y = jnp.dot(w_ref[...], cols_ref[...],
                preferred_element_type=jnp.float32) + bias  # (C_out, TBHW)
    out_ref[...] = jnp.tanh(y).astype(out_ref.dtype)


# ----------------------------------------------------------------------------
# Wrapper (layout plumbing only)
# ----------------------------------------------------------------------------
def _pick_tb(B, C_in, C_out, HW, budget_bytes=12 << 20):
    """Largest TB dividing B whose per-step VMEM footprint fits a conservative budget."""
    per_b = 2 * (2 * C_in + C_out) * HW * 4                 # double-buffered x / norm / out blocks
    per_b += 9 * C_in * HW * 2                              # bf16 im2col scratch
    per_b += 6 * C_in * HW * 4                              # live f32 temporaries headroom
    divisors = [d for d in range(1, B + 1) if B % d == 0]
    feasible = [d for d in divisors if d * per_b <= budget_bytes]
    return max(feasible) if feasible else 1


def spatial_self_correlation_forward(x, gamma, beta, conv_w, conv_b, *, tb=None):
    """x: (B, C_in, H, W) NCHW; conv_w: (C_out, C_in, 3, 3) torch OIHW; conv_b: (C_out,).

    Returns (tanh(conv(selfcorr_norm)), selfcorr_norm), exactly like the PyTorch module.
    """
    B, C_in, H, W = x.shape
    C_out = conv_w.shape[0]
    HW = H * W

    if tb is None:
        tb = _pick_tb(B, C_in, C_out, HW)
    assert B % tb == 0
    TBHW = tb * HW
    assert (TBHW % 128 == 0) or (tb == B), "need TB*H*W % 128 == 0 for lane-dense blocks"

    # Fold batch into the lane axis: x_lane[c, b*HW + n] = x[b, c, n].
    x_lane = jnp.transpose(x.reshape(B, C_in, HW).astype(jnp.float32),
                           (1, 0, 2)).reshape(C_in, B * HW)

    # Packed per-channel parameters: col 0 = gamma, col 1 = beta, col 2 = conv bias.
    c_pad = -(-max(C_in, C_out) // 8) * 8
    params = jnp.zeros((c_pad, 3), jnp.float32)
    params = params.at[:C_in, 0].set(gamma.astype(jnp.float32))
    params = params.at[:C_in, 1].set(beta.astype(jnp.float32))
    params = params.at[:C_out, 2].set(conv_b.astype(jnp.float32))

    # Conv weight, tap-major bf16: w_flat[:, k*C_in + ci] = conv_w[:, ci, dy+1, dx+1].
    w_flat = jnp.transpose(conv_w, (0, 2, 3, 1)).reshape(C_out, 9 * C_in).astype(jnp.bfloat16)

    kernel = functools.partial(_ssc_fused_kernel, H=H, W=W, C_in=C_in, C_out=C_out, TB=tb)
    out_lane, norm_lane = pl.pallas_call(
        kernel,
        out_shape=(jax.ShapeDtypeStruct((C_out, B * HW), jnp.float32),
                   jax.ShapeDtypeStruct((C_in, B * HW), jnp.float32)),
        grid=(B // tb,),
        in_specs=[
            pl.BlockSpec((C_in, TBHW), lambda i: (0, i)),        # x (TB frames per step)
            pl.BlockSpec((c_pad, 3), lambda i: (0, 0)),          # packed gamma/beta/bias
            pl.BlockSpec((C_out, 9 * C_in), lambda i: (0, 0)),   # conv weight (bf16)
        ],
        out_specs=(
            pl.BlockSpec((C_out, TBHW), lambda i: (0, i)),       # conv+tanh output
            pl.BlockSpec((C_in, TBHW), lambda i: (0, i)),        # normalized self-corr map
        ),
        scratch_shapes=[pltpu.VMEM((9 * C_in, TBHW), jnp.bfloat16)],
        compiler_params=pltpu.CompilerParams(
            dimension_semantics=("parallel",),
            vmem_limit_bytes=32 * 1024 * 1024),
    )(x_lane, params, w_flat)

    out = jnp.transpose(out_lane.reshape(C_out, B, HW), (1, 0, 2)).reshape(B, C_out, H, W)
    norm = jnp.transpose(norm_lane.reshape(C_in, B, HW), (1, 0, 2)).reshape(B, C_in, H, W)
    return out, norm


# ----------------------------------------------------------------------------
# Pure-JAX (XLA) reference of the PyTorch module, for validation
# ----------------------------------------------------------------------------
def _reference_forward(x, gamma, beta, conv_w, conv_b):
    B, C, H, W = x.shape
    HW = H * W
    hi = jax.lax.Precision.HIGHEST
    s = jax.nn.softmax(x, axis=1)
    xf = x.reshape(B, C, HW)
    sf = s.reshape(B, C, HW)
    p = jnp.einsum("bcn,bdn->bcd", xf, sf, precision=hi) / HW   # P[b,i,j]
    np_ = jnp.sqrt(jnp.sum(p * p, axis=1))                      # (B, C)  ||P[:, j]||
    nx_ = jnp.sqrt(jnp.sum(xf * xf, axis=1))                    # (B, HW) ||X[:, n]||
    corr = np_[:, :, None] * nx_[:, None, :]                    # (B, C, HW)
    z = xf + corr                                               # dropout(X) + corr (eval)
    mean = jnp.mean(z, axis=2, keepdims=True)
    var = jnp.mean((z - mean) ** 2, axis=2, keepdims=True)
    zn = (z - mean) / jnp.sqrt(var + 1e-5)
    zn = zn * gamma[None, :, None] + beta[None, :, None]
    selfcorr = zn.reshape(B, C, H, W)
    y = jax.lax.conv_general_dilated(
        selfcorr, conv_w, window_strides=(1, 1), padding=((1, 1), (1, 1)),
        dimension_numbers=("NCHW", "OIHW", "NCHW"), precision=hi)
    y = jnp.tanh(y + conv_b[None, :, None, None])
    return y, selfcorr


# ----------------------------------------------------------------------------
if __name__ == "__main__":
    key = jax.random.PRNGKey(0)
    kx, kg, kb, kw, kc = jax.random.split(key, 5)
    B, C_in, C_out, H, W = 2, 16, 8, 16, 16               # HW = 256 -> lane-dense tiles

    x = jax.random.normal(kx, (B, C_in, H, W), jnp.float32)
    gamma = 1.0 + 0.1 * jax.random.normal(kg, (C_in,), jnp.float32)
    beta = 0.05 * jax.random.normal(kb, (C_in,), jnp.float32)
    conv_w = 0.1 * jax.random.normal(kw, (C_out, C_in, 3, 3), jnp.float32)
    conv_b = 0.02 * jax.random.normal(kc, (C_out,), jnp.float32)

    fwd = jax.jit(spatial_self_correlation_forward)
    out, selfcorr = fwd(x, gamma, beta, conv_w, conv_b)
    jax.block_until_ready((out, selfcorr))

    assert out.shape == (B, C_out, H, W)
    assert selfcorr.shape == (B, C_in, H, W)
    assert bool(jnp.all(jnp.isfinite(out))) and bool(jnp.all(jnp.isfinite(selfcorr)))

    out_ref, selfcorr_ref = _reference_forward(x, gamma, beta, conv_w, conv_b)
    # selfcorr: both sides run the correlation dot at HIGHEST precision -> tight agreement.
    np.testing.assert_allclose(np.asarray(selfcorr), np.asarray(selfcorr_ref),
                               atol=1e-2, rtol=1e-2)
    # out: kernel conv runs in bf16 operands (f32 accumulation) vs f32 reference conv.
    np.testing.assert_allclose(np.asarray(out), np.asarray(out_ref),
                               atol=3e-2, rtol=3e-2)

    print("KERNEL_OK")
</pallas_src>

<mosaic_0001>
module attributes {stable_mosaic.version = 11 : i64} {
  func.func @_ssc_fused_kernel(%arg0: i32, %arg1: memref<16x512xf32, #tpu.memory_space<vmem>>, %arg2: memref<16x3xf32, #tpu.memory_space<vmem>>, %arg3: memref<8x144xbf16, #tpu.memory_space<vmem>>, %arg4: memref<8x512xf32, #tpu.memory_space<vmem>>, %arg5: memref<16x512xf32, #tpu.memory_space<vmem>>, %arg6: memref<144x512xbf16, #tpu.memory_space<vmem>>) attributes {dimension_semantics = [#tpu.dimension_semantics<parallel>], iteration_bounds = array<i64: 1>, scalar_prefetch = 0 : i64, scratch_operands = 1 : i64, tpu.core_type = #tpu.core_type<tc>, window_params = [{transform_indices = @transform_0, window_bounds = array<i64: 16, 512>}, {pipeline_mode = #tpu.pipeline_mode<synchronous>, transform_indices = @transform_1, window_bounds = array<i64: 16, 3>}, {pipeline_mode = #tpu.pipeline_mode<synchronous>, transform_indices = @transform_2, window_bounds = array<i64: 8, 144>}, {transform_indices = @transform_3, window_bounds = array<i64: 8, 512>}, {transform_indices = @transform_4, window_bounds = array<i64: 16, 512>}]} {
    %c0 = arith.constant 0 : index
    %c0_0 = arith.constant 0 : index
    %0 = vector.load %arg1[%c0, %c0_0] : memref<16x512xf32, #tpu.memory_space<vmem>>, vector<16x512xf32>
    %c0_1 = arith.constant 0 : index
    %c0_2 = arith.constant 0 : index
    %1 = vector.load %arg2[%c0_1, %c0_2] : memref<16x3xf32, #tpu.memory_space<vmem>>, vector<16x3xf32>
    %2 = vector.extract_strided_slice %1 {offsets = [0, 0], sizes = [16, 1], strides = [1, 1]} : vector<16x3xf32> to vector<16x1xf32>
    %3 = vector.extract_strided_slice %1 {offsets = [0, 1], sizes = [16, 1], strides = [1, 1]} : vector<16x3xf32> to vector<16x1xf32>
    %4 = vector.extract_strided_slice %1 {offsets = [0, 2], sizes = [8, 1], strides = [1, 1]} : vector<16x3xf32> to vector<8x1xf32>
    %cst = arith.constant dense<0xFF800000> : vector<512xf32>
    %5 = vector.multi_reduction <maximumf>, %0, %cst [0] : vector<16x512xf32> to vector<512xf32>
    %6 = vector.shape_cast %5 : vector<512xf32> to vector<1x512xf32>
    %7 = vector.broadcast %6 : vector<1x512xf32> to vector<16x512xf32>
    %8 = arith.subf %0, %7 : vector<16x512xf32>
    %9 = math.exp %8 : vector<16x512xf32>
    %cst_3 = arith.constant dense<0.000000e+00> : vector<512xf32>
    %10 = vector.multi_reduction <add>, %9, %cst_3 [0] : vector<16x512xf32> to vector<512xf32>
    %11 = vector.shape_cast %10 : vector<512xf32> to vector<1x512xf32>
    %12 = vector.broadcast %11 : vector<1x512xf32> to vector<16x512xf32>
    %13 = arith.divf %9, %12 : vector<16x512xf32>
    %14 = arith.mulf %0, %0 : vector<16x512xf32>
    %cst_4 = arith.constant dense<0.000000e+00> : vector<512xf32>
    %15 = vector.multi_reduction <add>, %14, %cst_4 [0] : vector<16x512xf32> to vector<512xf32>
    %16 = vector.shape_cast %15 : vector<512xf32> to vector<1x512xf32>
    %17 = math.sqrt %16 : vector<1x512xf32>
    %18 = vector.extract_strided_slice %0 {offsets = [0, 0], sizes = [16, 256], strides = [1, 1]} : vector<16x512xf32> to vector<16x256xf32>
    %19 = vector.extract_strided_slice %13 {offsets = [0, 0], sizes = [16, 256], strides = [1, 1]} : vector<16x512xf32> to vector<16x256xf32>
    %cst_5 = arith.constant dense<0.000000e+00> : vector<16x16xf32>
    %20 = tpu.matmul %19, %18, %cst_5 {dimension_numbers = #tpu.dot_dimension_numbers<[1], [1], [0], [0], [0, 0, 1, 0], [], []>, precision = #tpu.contract_precision<fp32>} : vector<16x256xf32>, vector<16x256xf32>, vector<16x16xf32> -> vector<16x16xf32>
    %cst_6 = arith.constant 3.906250e-03 : f32
    %21 = vector.broadcast %cst_6 : f32 to vector<16x16xf32>
    %22 = arith.mulf %20, %21 : vector<16x16xf32>
    %23 = arith.mulf %22, %22 : vector<16x16xf32>
    %cst_7 = arith.constant dense<0.000000e+00> : vector<16xf32>
    %24 = vector.multi_reduction <add>, %23, %cst_7 [1] : vector<16x16xf32> to vector<16xf32>
    %25 = vector.shape_cast %24 : vector<16xf32> to vector<16x1xf32>
    %26 = math.sqrt %25 : vector<16x1xf32>
    %27 = vector.extract_strided_slice %17 {offsets = [0, 0], sizes = [1, 256], strides = [1, 1]} : vector<1x512xf32> to vector<1x256xf32>
    %28 = vector.broadcast %26 : vector<16x1xf32> to vector<16x256xf32>
    %29 = vector.broadcast %27 : vector<1x256xf32> to vector<16x256xf32>
    %30 = arith.mulf %28, %29 : vector<16x256xf32>
    %31 = arith.addf %18, %30 : vector<16x256xf32>
    %cst_8 = arith.constant dense<0.000000e+00> : vector<16xf32>
    %32 = vector.multi_reduction <add>, %31, %cst_8 [1] : vector<16x256xf32> to vector<16xf32>
    %33 = vector.shape_cast %32 : vector<16xf32> to vector<16x1xf32>
    %cst_9 = arith.constant 3.906250e-03 : f32
    %34 = vector.broadcast %cst_9 : f32 to vector<16x1xf32>
    %35 = arith.mulf %33, %34 : vector<16x1xf32>
    %36 = arith.mulf %31, %31 : vector<16x256xf32>
    %cst_10 = arith.constant dense<0.000000e+00> : vector<16xf32>
    %37 = vector.multi_reduction <add>, %36, %cst_10 [1] : vector<16x256xf32> to vector<16xf32>
    %38 = vector.shape_cast %37 : vector<16xf32> to vector<16x1xf32>
    %cst_11 = arith.constant 3.906250e-03 : f32
    %39 = vector.broadcast %cst_11 : f32 to vector<16x1xf32>
    %40 = arith.mulf %38, %39 : vector<16x1xf32>
    %41 = arith.mulf %35, %35 : vector<16x1xf32>
    %42 = arith.subf %40, %41 : vector<16x1xf32>
    %cst_12 = arith.constant 0.000000e+00 : f32
    %43 = vector.broadcast %cst_12 : f32 to vector<16x1xf32>
    %44 = arith.maximumf %42, %43 : vector<16x1xf32>
    %45 = vector.broadcast %35 : vector<16x1xf32> to vector<16x256xf32>
    %46 = arith.subf %31, %45 : vector<16x256xf32>
    %cst_13 = arith.constant 9.99999974E-6 : f32
    %47 = vector.broadcast %cst_13 : f32 to vector<16x1xf32>
    %48 = arith.addf %44, %47 : vector<16x1xf32>
    %49 = math.rsqrt %48 : vector<16x1xf32>
    %50 = vector.broadcast %49 : vector<16x1xf32> to vector<16x256xf32>
    %51 = arith.mulf %46, %50 : vector<16x256xf32>
    %52 = vector.broadcast %2 : vector<16x1xf32> to vector<16x256xf32>
    %53 = arith.mulf %51, %52 : vector<16x256xf32>
    %54 = vector.broadcast %3 : vector<16x1xf32> to vector<16x256xf32>
    %55 = arith.addf %53, %54 : vector<16x256xf32>
    %c0_14 = arith.constant 0 : index
    %c0_15 = arith.constant 0 : index
    %56 = vector.load %arg5[%c0_14, %c0_15] : memref<16x512xf32, #tpu.memory_space<vmem>>, vector<16x256xf32>
    tpu.vector_store %arg5[%c0_14, %c0_15], %55 {strides = array<i32>} : memref<16x512xf32, #tpu.memory_space<vmem>>, vector<16x256xf32>,
    %57 = vector.extract_strided_slice %0 {offsets = [0, 256], sizes = [16, 256], strides = [1, 1]} : vector<16x512xf32> to vector<16x256xf32>
    %58 = vector.extract_strided_slice %13 {offsets = [0, 256], sizes = [16, 256], strides = [1, 1]} : vector<16x512xf32> to vector<16x256xf32>
    %cst_16 = arith.constant dense<0.000000e+00> : vector<16x16xf32>
    %59 = tpu.matmul %58, %57, %cst_16 {dimension_numbers = #tpu.dot_dimension_numbers<[1], [1], [0], [0], [0, 0, 1, 0], [], []>, precision = #tpu.contract_precision<fp32>} : vector<16x256xf32>, vector<16x256xf32>, vector<16x16xf32> -> vector<16x16xf32>
    %cst_17 = arith.constant 3.906250e-03 : f32
    %60 = vector.broadcast %cst_17 : f32 to vector<16x16xf32>
    %61 = arith.mulf %59, %60 : vector<16x16xf32>
    %62 = arith.mulf %61, %61 : vector<16x16xf32>
    %cst_18 = arith.constant dense<0.000000e+00> : vector<16xf32>
    %63 = vector.multi_reduction <add>, %62, %cst_18 [1] : vector<16x16xf32> to vector<16xf32>
    %64 = vector.shape_cast %63 : vector<16xf32> to vector<16x1xf32>
    %65 = math.sqrt %64 : vector<16x1xf32>
    %66 = vector.extract_strided_slice %17 {offsets = [0, 256], sizes = [1, 256], strides = [1, 1]} : vector<1x512xf32> to vector<1x256xf32>
    %67 = vector.broadcast %65 : vector<16x1xf32> to vector<16x256xf32>
    %68 = vector.broadcast %66 : vector<1x256xf32> to vector<16x256xf32>
    %69 = arith.mulf %67, %68 : vector<16x256xf32>
    %70 = arith.addf %57, %69 : vector<16x256xf32>
    %cst_19 = arith.constant dense<0.000000e+00> : vector<16xf32>
    %71 = vector.multi_reduction <add>, %70, %cst_19 [1] : vector<16x256xf32> to vector<16xf32>
    %72 = vector.shape_cast %71 : vector<16xf32> to vector<16x1xf32>
    %cst_20 = arith.constant 3.906250e-03 : f32
    %73 = vector.broadcast %cst_20 : f32 to vector<16x1xf32>
    %74 = arith.mulf %72, %73 : vector<16x1xf32>
    %75 = arith.mulf %70, %70 : vector<16x256xf32>
    %cst_21 = arith.constant dense<0.000000e+00> : vector<16xf32>
    %76 = vector.multi_reduction <add>, %75, %cst_21 [1] : vector<16x256xf32> to vector<16xf32>
    %77 = vector.shape_cast %76 : vector<16xf32> to vector<16x1xf32>
    %cst_22 = arith.constant 3.906250e-03 : f32
    %78 = vector.broadcast %cst_22 : f32 to vector<16x1xf32>
    %79 = arith.mulf %77, %78 : vector<16x1xf32>
    %80 = arith.mulf %74, %74 : vector<16x1xf32>
    %81 = arith.subf %79, %80 : vector<16x1xf32>
    %cst_23 = arith.constant 0.000000e+00 : f32
    %82 = vector.broadcast %cst_23 : f32 to vector<16x1xf32>
    %83 = arith.maximumf %81, %82 : vector<16x1xf32>
    %84 = vector.broadcast %74 : vector<16x1xf32> to vector<16x256xf32>
    %85 = arith.subf %70, %84 : vector<16x256xf32>
    %cst_24 = arith.constant 9.99999974E-6 : f32
    %86 = vector.broadcast %cst_24 : f32 to vector<16x1xf32>
    %87 = arith.addf %83, %86 : vector<16x1xf32>
    %88 = math.rsqrt %87 : vector<16x1xf32>
    %89 = vector.broadcast %88 : vector<16x1xf32> to vector<16x256xf32>
    %90 = arith.mulf %85, %89 : vector<16x256xf32>
    %91 = vector.broadcast %2 : vector<16x1xf32> to vector<16x256xf32>
    %92 = arith.mulf %90, %91 : vector<16x256xf32>
    %93 = vector.broadcast %3 : vector<16x1xf32> to vector<16x256xf32>
    %94 = arith.addf %92, %93 : vector<16x256xf32>
    %c0_25 = arith.constant 0 : index
    %c256 = arith.constant 256 : index
    %95 = vector.load %arg5[%c0_25, %c256] : memref<16x512xf32, #tpu.memory_space<vmem>>, vector<16x256xf32>
    tpu.vector_store %arg5[%c0_25, %c256], %94 {strides = array<i32>} : memref<16x512xf32, #tpu.memory_space<vmem>>, vector<16x256xf32>,
    %c0_26 = arith.constant 0 : index
    %c0_27 = arith.constant 0 : index
    %96 = vector.load %arg5[%c0_26, %c0_27] : memref<16x512xf32, #tpu.memory_space<vmem>>, vector<16x512xf32>
    %97 = tpu.iota {dimensions = array<i32: 1>} : vector<1x512xi32>
    %c16_i32 = arith.constant 16 : i32
    %c0_i32 = arith.constant 0 : i32
    %98 = arith.cmpi eq, %c16_i32, %c0_i32 : i32
    %c1_i32 = arith.constant 1 : i32
    %99 = arith.select %98, %c1_i32, %c16_i32 : i32
    %100 = vector.broadcast %99 : i32 to vector<1x512xi32>
    %101 = arith.remsi %97, %100 : vector<1x512xi32>
    %c0_i32_28 = arith.constant 0 : i32
    %102 = vector.broadcast %c0_i32_28 : i32 to vector<1x512xi32>
    %103 = arith.cmpi ne, %101, %102 : vector<1x512xi32>
    %c0_i32_29 = arith.constant 0 : i32
    %104 = vector.broadcast %c0_i32_29 : i32 to vector<1x512xi32>
    %105 = arith.cmpi slt, %101, %104 : vector<1x512xi32>
    %c0_i32_30 = arith.constant 0 : i32
    %106 = arith.cmpi slt, %99, %c0_i32_30 : i32
    %107 = vector.broadcast %106 : i1 to vector<1x512xi1>
    %108 = vector.broadcast %107 : vector<1x512xi1> to vector<1x512xi1>
    %109 = arith.xori %105, %108 : vector<1x512xi1>
    %110 = arith.andi %109, %103 : vector<1x512xi1>
    %111 = vector.broadcast %99 : i32 to vector<1x512xi32>
    %112 = arith.addi %101, %111 : vector<1x512xi32>
    %113 = arith.select %110, %112, %101 : vector<1x512xi1>, vector<1x512xi32>
    %c256_i32 = arith.constant 256 : i32
    %c0_i32_31 = arith.constant 0 : i32
    %114 = arith.cmpi eq, %c256_i32, %c0_i32_31 : i32
    %c1_i32_32 = arith.constant 1 : i32
    %115 = arith.select %114, %c1_i32_32, %c256_i32 : i32
    %116 = vector.broadcast %115 : i32 to vector<1x512xi32>
    %117 = arith.remsi %97, %116 : vector<1x512xi32>
    %c0_i32_33 = arith.constant 0 : i32
    %118 = vector.broadcast %c0_i32_33 : i32 to vector<1x512xi32>
    %119 = arith.cmpi ne, %117, %118 : vector<1x512xi32>
    %c0_i32_34 = arith.constant 0 : i32
    %120 = vector.broadcast %c0_i32_34 : i32 to vector<1x512xi32>
    %121 = arith.cmpi slt, %117, %120 : vector<1x512xi32>
    %c0_i32_35 = arith.constant 0 : i32
    %122 = arith.cmpi slt, %115, %c0_i32_35 : i32
    %123 = vector.broadcast %122 : i1 to vector<1x512xi1>
    %124 = vector.broadcast %123 : vector<1x512xi1> to vector<1x512xi1>
    %125 = arith.xori %121, %124 : vector<1x512xi1>
    %126 = arith.andi %125, %119 : vector<1x512xi1>
    %127 = vector.broadcast %115 : i32 to vector<1x512xi32>
    %128 = arith.addi %117, %127 : vector<1x512xi32>
    %129 = arith.select %126, %128, %117 : vector<1x512xi1>, vector<1x512xi32>
    %c16_i32_36 = arith.constant 16 : i32
    %130 = vector.broadcast %c16_i32_36 : i32 to vector<1x512xi32>
    %131 = arith.cmpi sge, %129, %130 : vector<1x512xi32>
    %c240_i32 = arith.constant 240 : i32
    %132 = vector.broadcast %c240_i32 : i32 to vector<1x512xi32>
    %133 = arith.cmpi slt, %129, %132 : vector<1x512xi32>
    %c1_i32_37 = arith.constant 1 : i32
    %134 = vector.broadcast %c1_i32_37 : i32 to vector<1x512xi32>
    %135 = arith.cmpi sge, %113, %134 : vector<1x512xi32>
    %c15_i32 = arith.constant 15 : i32
    %136 = vector.broadcast %c15_i32 : i32 to vector<1x512xi32>
    %137 = arith.cmpi slt, %113, %136 : vector<1x512xi32>
    %c17_i32 = arith.constant 17 : i32
    %138 = tpu.dynamic_rotate %96 by %c17_i32 dim 1 : vector<16x512xf32>, i32 -> vector<16x512xf32>
    %139 = arith.andi %131, %135 : vector<1x512xi1>
    %cst_38 = arith.constant 0.000000e+00 : f32
    %140 = vector.shape_cast %139 : vector<1x512xi1> to vector<1x512xi1>
    %141 = vector.broadcast %140 : vector<1x512xi1> to vector<16x512xi1>
    %142 = vector.broadcast %cst_38 : f32 to vector<16x512xf32>
    %143 = arith.select %141, %138, %142 : vector<16x512xi1>, vector<16x512xf32>
    %144 = arith.truncf %143 : vector<16x512xf32> to vector<16x512xbf16>
    %c0_39 = arith.constant 0 : index
    %c0_40 = arith.constant 0 : index
    %145 = vector.load %arg6[%c0_39, %c0_40] : memref<144x512xbf16, #tpu.memory_space<vmem>>, vector<16x512xbf16>
    tpu.vector_store %arg6[%c0_39, %c0_40], %144 {strides = array<i32>} : memref<144x512xbf16, #tpu.memory_space<vmem>>, vector<16x512xbf16>,
    %c16_i32_41 = arith.constant 16 : i32
    %146 = tpu.dynamic_rotate %96 by %c16_i32_41 dim 1 : vector<16x512xf32>, i32 -> vector<16x512xf32>
    %cst_42 = arith.constant 0.000000e+00 : f32
    %147 = vector.shape_cast %131 : vector<1x512xi1> to vector<1x512xi1>
    %148 = vector.broadcast %147 : vector<1x512xi1> to vector<16x512xi1>
    %149 = vector.broadcast %cst_42 : f32 to vector<16x512xf32>
    %150 = arith.select %148, %146, %149 : vector<16x512xi1>, vector<16x512xf32>
    %151 = arith.truncf %150 : vector<16x512xf32> to vector<16x512xbf16>
    %c16 = arith.constant 16 : index
    %c0_43 = arith.constant 0 : index
    %152 = vector.load %arg6[%c16, %c0_43] : memref<144x512xbf16, #tpu.memory_space<vmem>>, vector<16x512xbf16>
    tpu.vector_store %arg6[%c16, %c0_43], %151 {strides = array<i32>} : memref<144x512xbf16, #tpu.memory_space<vmem>>, vector<16x512xbf16>,
    %c15_i32_44 = arith.constant 15 : i32
    %153 = tpu.dynamic_rotate %96 by %c15_i32_44 dim 1 : vector<16x512xf32>, i32 -> vector<16x512xf32>
    %154 = arith.andi %131, %137 : vector<1x512xi1>
    %cst_45 = arith.constant 0.000000e+00 : f32
    %155 = vector.shape_cast %154 : vector<1x512xi1> to vector<1x512xi1>
    %156 = vector.broadcast %155 : vector<1x512xi1> to vector<16x512xi1>
    %157 = vector.broadcast %cst_45 : f32 to vector<16x512xf32>
    %158 = arith.select %156, %153, %157 : vector<16x512xi1>, vector<16x512xf32>
    %159 = arith.truncf %158 : vector<16x512xf32> to vector<16x512xbf16>
    %c32 = arith.constant 32 : index
    %c0_46 = arith.constant 0 : index
    %160 = vector.load %arg6[%c32, %c0_46] : memref<144x512xbf16, #tpu.memory_space<vmem>>, vector<16x512xbf16>
    tpu.vector_store %arg6[%c32, %c0_46], %159 {strides = array<i32>} : memref<144x512xbf16, #tpu.memory_space<vmem>>, vector<16x512xbf16>,
    %c1_i32_47 = arith.constant 1 : i32
    %161 = tpu.dynamic_rotate %96 by %c1_i32_47 dim 1 : vector<16x512xf32>, i32 -> vector<16x512xf32>
    %cst_48 = arith.constant 0.000000e+00 : f32
    %162 = vector.shape_cast %135 : vector<1x512xi1> to vector<1x512xi1>
    %163 = vector.broadcast %162 : vector<1x512xi1> to vector<16x512xi1>
    %164 = vector.broadcast %cst_48 : f32 to vector<16x512xf32>
    %165 = arith.select %163, %161, %164 : vector<16x512xi1>, vector<16x512xf32>
    %166 = arith.truncf %165 : vector<16x512xf32> to vector<16x512xbf16>
    %c48 = arith.constant 48 : index
    %c0_49 = arith.constant 0 : index
    %167 = vector.load %arg6[%c48, %c0_49] : memref<144x512xbf16, #tpu.memory_space<vmem>>, vector<16x512xbf16>
    tpu.vector_store %arg6[%c48, %c0_49], %166 {strides = array<i32>} : memref<144x512xbf16, #tpu.memory_space<vmem>>, vector<16x512xbf16>,
    %168 = arith.truncf %96 : vector<16x512xf32> to vector<16x512xbf16>
    %c64 = arith.constant 64 : index
    %c0_50 = arith.constant 0 : index
    %169 = vector.load %arg6[%c64, %c0_50] : memref<144x512xbf16, #tpu.memory_space<vmem>>, vector<16x512xbf16>
    tpu.vector_store %arg6[%c64, %c0_50], %168 {strides = array<i32>} : memref<144x512xbf16, #tpu.memory_space<vmem>>, vector<16x512xbf16>,
    %c511_i32 = arith.constant 511 : i32
    %170 = tpu.dynamic_rotate %96 by %c511_i32 dim 1 : vector<16x512xf32>, i32 -> vector<16x512xf32>
    %cst_51 = arith.constant 0.000000e+00 : f32
    %171 = vector.shape_cast %137 : vector<1x512xi1> to vector<1x512xi1>
    %172 = vector.broadcast %171 : vector<1x512xi1> to vector<16x512xi1>
    %173 = vector.broadcast %cst_51 : f32 to vector<16x512xf32>
    %174 = arith.select %172, %170, %173 : vector<16x512xi1>, vector<16x512xf32>
    %175 = arith.truncf %174 : vector<16x512xf32> to vector<16x512xbf16>
    %c80 = arith.constant 80 : index
    %c0_52 = arith.constant 0 : index
    %176 = vector.load %arg6[%c80, %c0_52] : memref<144x512xbf16, #tpu.memory_space<vmem>>, vector<16x512xbf16>
    tpu.vector_store %arg6[%c80, %c0_52], %175 {strides = array<i32>} : memref<144x512xbf16, #tpu.memory_space<vmem>>, vector<16x512xbf16>,
    %c497_i32 = arith.constant 497 : i32
    %177 = tpu.dynamic_rotate %96 by %c497_i32 dim 1 : vector<16x512xf32>, i32 -> vector<16x512xf32>
    %178 = arith.andi %133, %135 : vector<1x512xi1>
    %cst_53 = arith.constant 0.000000e+00 : f32
    %179 = vector.shape_cast %178 : vector<1x512xi1> to vector<1x512xi1>
    %180 = vector.broadcast %179 : vector<1x512xi1> to vector<16x512xi1>
    %181 = vector.broadcast %cst_53 : f32 to vector<16x512xf32>
    %182 = arith.select %180, %177, %181 : vector<16x512xi1>, vector<16x512xf32>
    %183 = arith.truncf %182 : vector<16x512xf32> to vector<16x512xbf16>
    %c96 = arith.constant 96 : index
    %c0_54 = arith.constant 0 : index
    %184 = vector.load %arg6[%c96, %c0_54] : memref<144x512xbf16, #tpu.memory_space<vmem>>, vector<16x512xbf16>
    tpu.vector_store %arg6[%c96, %c0_54], %183 {strides = array<i32>} : memref<144x512xbf16, #tpu.memory_space<vmem>>, vector<16x512xbf16>,
    %c496_i32 = arith.constant 496 : i32
    %185 = tpu.dynamic_rotate %96 by %c496_i32 dim 1 : vector<16x512xf32>, i32 -> vector<16x512xf32>
    %cst_55 = arith.constant 0.000000e+00 : f32
    %186 = vector.shape_cast %133 : vector<1x512xi1> to vector<1x512xi1>
    %187 = vector.broadcast %186 : vector<1x512xi1> to vector<16x512xi1>
    %188 = vector.broadcast %cst_55 : f32 to vector<16x512xf32>
    %189 = arith.select %187, %185, %188 : vector<16x512xi1>, vector<16x512xf32>
    %190 = arith.truncf %189 : vector<16x512xf32> to vector<16x512xbf16>
    %c112 = arith.constant 112 : index
    %c0_56 = arith.constant 0 : index
    %191 = vector.load %arg6[%c112, %c0_56] : memref<144x512xbf16, #tpu.memory_space<vmem>>, vector<16x512xbf16>
    tpu.vector_store %arg6[%c112, %c0_56], %190 {strides = array<i32>} : memref<144x512xbf16, #tpu.memory_space<vmem>>, vector<16x512xbf16>,
    %c495_i32 = arith.constant 495 : i32
    %192 = tpu.dynamic_rotate %96 by %c495_i32 dim 1 : vector<16x512xf32>, i32 -> vector<16x512xf32>
    %193 = arith.andi %133, %137 : vector<1x512xi1>
    %cst_57 = arith.constant 0.000000e+00 : f32
    %194 = vector.shape_cast %193 : vector<1x512xi1> to vector<1x512xi1>
    %195 = vector.broadcast %194 : vector<1x512xi1> to vector<16x512xi1>
    %196 = vector.broadcast %cst_57 : f32 to vector<16x512xf32>
    %197 = arith.select %195, %192, %196 : vector<16x512xi1>, vector<16x512xf32>
    %198 = arith.truncf %197 : vector<16x512xf32> to vector<16x512xbf16>
    %c128 = arith.constant 128 : index
    %c0_58 = arith.constant 0 : index
    %199 = vector.load %arg6[%c128, %c0_58] : memref<144x512xbf16, #tpu.memory_space<vmem>>, vector<16x512xbf16>
    tpu.vector_store %arg6[%c128, %c0_58], %198 {strides = array<i32>} : memref<144x512xbf16, #tpu.memory_space<vmem>>, vector<16x512xbf16>,
    %c0_59 = arith.constant 0 : index
    %c0_60 = arith.constant 0 : index
    %200 = vector.load %arg3[%c0_59, %c0_60] : memref<8x144xbf16, #tpu.memory_space<vmem>>, vector<8x144xbf16>
    %c0_61 = arith.constant 0 : index
    %c0_62 = arith.constant 0 : index
    %201 = vector.load %arg6[%c0_61, %c0_62] : memref<144x512xbf16, #tpu.memory_space<vmem>>, vector<144x512xbf16>
    %cst_63 = arith.constant dense<0.000000e+00> : vector<8x512xf32>
    %202 = tpu.matmul %200, %201, %cst_63 {dimension_numbers = #tpu.dot_dimension_numbers<[1], [0], [0], [1], [0, 0, 1, 1], [], []>} : vector<8x144xbf16>, vector<144x512xbf16>, vector<8x512xf32> -> vector<8x512xf32>
    %203 = vector.broadcast %4 : vector<8x1xf32> to vector<8x512xf32>
    %204 = arith.addf %202, %203 : vector<8x512xf32>
    %205 = math.tanh %204 : vector<8x512xf32>
    %c0_64 = arith.constant 0 : index
    %c0_65 = arith.constant 0 : index
    %206 = vector.load %arg4[%c0_64, %c0_65] : memref<8x512xf32, #tpu.memory_space<vmem>>, vector<8x512xf32>
    tpu.vector_store %arg4[%c0_64, %c0_65], %205 {strides = array<i32>} : memref<8x512xf32, #tpu.memory_space<vmem>>, vector<8x512xf32>,
    return
  }
  func.func @transform_0(%arg0: i32) -> (i32, i32) {
    %c0_i32 = arith.constant 0 : i32
    %c0_i32_0 = arith.constant 0 : i32
    return %c0_i32, %arg0 : i32, i32
  }
  func.func @transform_1(%arg0: i32) -> (i32, i32) {
    %c0_i32 = arith.constant 0 : i32
    %c0_i32_0 = arith.constant 0 : i32
    %c0_i32_1 = arith.constant 0 : i32
    return %c0_i32, %c0_i32_0 : i32, i32
  }
  func.func @transform_2(%arg0: i32) -> (i32, i32) {
    %c0_i32 = arith.constant 0 : i32
    %c0_i32_0 = arith.constant 0 : i32
    %c0_i32_1 = arith.constant 0 : i32
    return %c0_i32, %c0_i32_0 : i32, i32
  }
  func.func @transform_3(%arg0: i32) -> (i32, i32) {
    %c0_i32 = arith.constant 0 : i32
    %c0_i32_0 = arith.constant 0 : i32
    return %c0_i32, %arg0 : i32, i32
  }
  func.func @transform_4(%arg0: i32) -> (i32, i32) {
    %c0_i32 = arith.constant 0 : i32
    %c0_i32_0 = arith.constant 0 : i32
    return %c0_i32, %arg0 : i32, i32
  }
}

</mosaic_0001>

<llo_original>
// kernel: spatial_self_correlation_forward.1
$region0: #{spatial_self_correlation_forward.1}
  #allocation0 [shape = 'u32[]', space=smem, size = 0x4, offset = 0x4, fixed_abs, tag = 'smem constant byte address 0x4 - core index']
  #allocation1 [shape = 'u32[144,128]{1,0:T(1,128)}', space=vmem, size = 0x12000, scoped, tag = 'internal scratch']
  #allocation2 [shape = 'bf16[144,512]{1,0:T(8,128)(2,1)}', space=vmem, size = 0x24000, scoped, tag = 'scratch operand']
  %s0 = inlined_call_operand.vmem [shape: f32[16,512], index: 0, kind: input, shape index: {}]
  %s1 = inlined_call_operand.vmem [shape: f32[16,3], index: 1, kind: input, shape index: {}]
  %s2 = inlined_call_operand.vmem [shape: bf16[8,144], index: 2, kind: input, shape index: {}]
  %s3 = inlined_call_operand.vmem [shape: f32[8,512], index: 3, kind: output, shape index: {0}]
  %s4 = inlined_call_operand.vmem [shape: f32[16,512], index: 4, kind: output, shape index: {1}]
  %5 = xla_tuple %s3, %s4
  %s6 = sld [smem:[#allocation0]]
  $region30: #{spatial_self_correlation_forward.1} parent=0
    _
  %s8 = ssub.s32 1, %s6
  %s9 = scalar_select 0, %s8, %s6
  // Predicated region
  $region2: #{spatial_self_correlation_forward.1} parent=0 // pred_check
    _
  $region3: #{spatial_self_correlation_forward.1} parent=0 // pred_check_branch
    %11 = sbr.rel (0) target = $region5
  $region4: #{spatial_self_correlation_forward.1} parent=0 // pred_region
    _
  $region5: #{spatial_self_correlation_forward.1} parent=0 // pred_fallthru
    _
  // Predicated region
  $region6: #{spatial_self_correlation_forward.1} parent=0 // pred_check
    _
  $region7: #{spatial_self_correlation_forward.1} parent=0 // pred_check_branch
    %13 = sbr.rel (0) target = $region9
  $region8: #{spatial_self_correlation_forward.1} parent=0 // pred_region
    _
  $region9: #{spatial_self_correlation_forward.1} parent=0 // pred_fallthru
    _
  // Predicated region
  $region10: #{spatial_self_correlation_forward.1} parent=0 // pred_check
    _
  $region11: #{spatial_self_correlation_forward.1} parent=0 // pred_check_branch
    %15 = sbr.rel (0) target = $region13
  $region12: #{spatial_self_correlation_forward.1} parent=0 // pred_region
    _
  $region13: #{spatial_self_correlation_forward.1} parent=0 // pred_fallthru
    _
  %v17 = vld [vmem:[%s0] sm:$0xff]
  %v18 = vld [vmem:[%s0 + $0x8] sm:$0xff]
  %v19 = vld [vmem:[%s0 + $0x10] sm:$0xff]
  %v20 = vld [vmem:[%s0 + $0x18] sm:$0xff]
  %v21 = vld [vmem:[%s0 + $0x20] sm:$0xff]
  %v22 = vld [vmem:[%s0 + $0x28] sm:$0xff]
  %v23 = vld [vmem:[%s0 + $0x30] sm:$0xff]
  %v24 = vld [vmem:[%s0 + $0x38] sm:$0xff]
  %v25 = vld [vmem:[%s1] sm:$0xff]
  %v26 = vld [vmem:[%s1 + $0x8] sm:$0xff]
  %v27 = vmax.f32 %v17, %v21
  %v28 = vrot.slane %v27, 4
  %v29 = vmax.f32 %v27, %v28
  %v30 = vrot.slane %v29, 2
  %v31 = vmax.f32 %v29, %v30
  %v32 = vrot.slane %v31, 1
  %v33 = vmax.f32 %v31, %v32
  %v34 = vmax.f32 %v18, %v22
  %v35 = vrot.slane %v34, 4
  %v36 = vmax.f32 %v34, %v35
  %v37 = vrot.slane %v36, 2
  %v38 = vmax.f32 %v36, %v37
  %v39 = vrot.slane %v38, 1
  %v40 = vmax.f32 %v38, %v39
  %v41 = vmax.f32 %v19, %v23
  %v42 = vrot.slane %v41, 4
  %v43 = vmax.f32 %v41, %v42
  %v44 = vrot.slane %v43, 2
  %v45 = vmax.f32 %v43, %v44
  %v46 = vrot.slane %v45, 1
  %v47 = vmax.f32 %v45, %v46
  %v48 = vmax.f32 %v20, %v24
  %v49 = vrot.slane %v48, 4
  %v50 = vmax.f32 %v48, %v49
  %v51 = vrot.slane %v50, 2
  %v52 = vmax.f32 %v50, %v51
  %v53 = vrot.slane %v52, 1
  %v54 = vmax.f32 %v52, %v53
  %v55 = vsub.f32 %v17, %v33
  %v56 = vsub.f32 %v18, %v40
  %v57 = vsub.f32 %v19, %v47
  %v58 = vsub.f32 %v20, %v54
  %v59 = vsub.f32 %v21, %v33
  %v60 = vsub.f32 %v22, %v40
  %v61 = vsub.f32 %v23, %v47
  %v62 = vsub.f32 %v24, %v54
  %v63 = vmul.f32 %v55, 1.442695
  %v64 = vpow.pop %v63
  %v65 = vmul.f32 %v56, 1.442695
  %v66 = vpow.pop %v65
  %v67 = vmul.f32 %v57, 1.442695
  %v68 = vpow.pop %v67
  %v69 = vmul.f32 %v58, 1.442695
  %v70 = vpow.pop %v69
  %v71 = vmul.f32 %v59, 1.442695
  %v72 = vpow.pop %v71
  %v73 = vmul.f32 %v60, 1.442695
  %v74 = vpow.pop %v73
  %v75 = vmul.f32 %v61, 1.442695
  %v76 = vpow.pop %v75
  %v77 = vmul.f32 %v62, 1.442695
  %v78 = vpow.pop %v77
  %v79 = vadd.f32 %v64, %v72
  %v80 = vrot.slane %v79, 4
  %v81 = vadd.f32 %v79, %v80
  %v82 = vrot.slane %v81, 2
  %v83 = vadd.f32 %v81, %v82
  %v84 = vrot.slane %v83, 1
  %v85 = vadd.f32 %v83, %v84
  %v86 = vadd.f32 %v66, %v74
  %v87 = vrot.slane %v86, 4
  %v88 = vadd.f32 %v86, %v87
  %v89 = vrot.slane %v88, 2
  %v90 = vadd.f32 %v88, %v89
  %v91 = vrot.slane %v90, 1
  %v92 = vadd.f32 %v90, %v91
  %v93 = vadd.f32 %v68, %v76
  %v94 = vrot.slane %v93, 4
  %v95 = vadd.f32 %v93, %v94
  %v96 = vrot.slane %v95, 2
  %v97 = vadd.f32 %v95, %v96
  %v98 = vrot.slane %v97, 1
  %v99 = vadd.f32 %v97, %v98
  %v100 = vadd.f32 %v70, %v78
  %v101 = vrot.slane %v100, 4
  %v102 = vadd.f32 %v100, %v101
  %v103 = vrot.slane %v102, 2
  %v104 = vadd.f32 %v102, %v103
  %v105 = vrot.slane %v104, 1
  %v106 = vadd.f32 %v104, %v105
  %v107 = vrcp.pop %v85
  %v108 = vmul.f32 %v64, %v107
  %v109 = vrcp.pop %v92
  %v110 = vmul.f32 %v66, %v109
  %v111 = vrcp.pop %v99
  %v112 = vmul.f32 %v68, %v111
  %v113 = vrcp.pop %v106
  %v114 = vmul.f32 %v70, %v113
  %v115 = vmul.f32 %v72, %v107
  %v116 = vmul.f32 %v74, %v109
  %v117 = vmul.f32 %v76, %v111
  %v118 = vmul.f32 %v78, %v113
  %v119 = vmul.f32 %v17, %v17
  %v120 = vmul.f32 %v18, %v18
  %v121 = vmul.f32 %v19, %v19
  %v122 = vmul.f32 %v20, %v20
  %v123 = vmul.f32 %v21, %v21
  %v124 = vmul.f32 %v22, %v22
  %v125 = vmul.f32 %v23, %v23
  %v126 = vmul.f32 %v24, %v24
  %v127 = vadd.f32 %v119, %v123
  %v128 = vrot.slane %v127, 4
  %v129 = vadd.f32 %v127, %v128
  %v130 = vrot.slane %v129, 2
  %v131 = vadd.f32 %v129, %v130
  %v132 = vrot.slane %v131, 1
  %v133 = vadd.f32 %v131, %v132
  %v134 = vadd.f32 %v120, %v124
  %v135 = vrot.slane %v134, 4
  %v136 = vadd.f32 %v134, %v135
  %v137 = vrot.slane %v136, 2
  %v138 = vadd.f32 %v136, %v137
  %v139 = vrot.slane %v138, 1
  %v140 = vadd.f32 %v138, %v139
  %v141 = vadd.f32 %v121, %v125
  %v142 = vrot.slane %v141, 4
  %v143 = vadd.f32 %v141, %v142
  %v144 = vrot.slane %v143, 2
  %v145 = vadd.f32 %v143, %v144
  %v146 = vrot.slane %v145, 1
  %v147 = vadd.f32 %v145, %v146
  %v148 = vadd.f32 %v122, %v126
  %v149 = vrot.slane %v148, 4
  %v150 = vadd.f32 %v148, %v149
  %v151 = vrot.slane %v150, 2
  %v152 = vadd.f32 %v150, %v151
  %v153 = vrot.slane %v152, 1
  %v154 = vadd.f32 %v152, %v153
  %v155 = vrsqrt.pop %v133
  %v156 = vmul.f32 %v133, %v155
  %vm157 = vcmp.eq.f32.partialorder %v133, inf
  %v158 = vsel %vm157, %v133, %v156
  %vm159 = vcmp.eq.f32.partialorder %v133, 0.0
  %v160 = vand.u32 %v133, 2147483648
  %v161 = vsel %vm159, %v160, %v158
  %v162 = vrsqrt.pop %v140
  %v163 = vmul.f32 %v140, %v162
  %vm164 = vcmp.eq.f32.partialorder %v140, inf
  %v165 = vsel %vm164, %v140, %v163
  %vm166 = vcmp.eq.f32.partialorder %v140, 0.0
  %v167 = vand.u32 %v140, 2147483648
  %v168 = vsel %vm166, %v167, %v165
  %v169 = vrsqrt.pop %v147
  %v170 = vmul.f32 %v147, %v169
  %vm171 = vcmp.eq.f32.partialorder %v147, inf
  %v172 = vsel %vm171, %v147, %v170
  %vm173 = vcmp.eq.f32.partialorder %v147, 0.0
  %v174 = vand.u32 %v147, 2147483648
  %v175 = vsel %vm173, %v174, %v172
  %v176 = vrsqrt.pop %v154
  %v177 = vmul.f32 %v154, %v176
  %vm178 = vcmp.eq.f32.partialorder %v154, inf
  %v179 = vsel %vm178, %v154, %v177
  %vm180 = vcmp.eq.f32.partialorder %v154, 0.0
  %v181 = vand.u32 %v154, 2147483648
  %v182 = vsel %vm180, %v181, %v179
  %183 = vmatprep.subr.mxu0 0.0
  %184 = vmatpush1.xpose.msra.mxu0 0.0
  %185 = vmatprep.subr.mxu0 0.0
  %186 = vmatpush1.xpose.msra.mxu0 0.0
  %187 = vmatprep.subr.mxu0 0.0
  %188 = vmatpush1.xpose.msra.mxu0 0.0
  %189 = vmatprep.subr.mxu0 0.0
  %190 = vmatpush1.xpose.msra.mxu0 0.0
  %191 = vmatprep.subr.mxu0 0.0
  %192 = vmatpush1.xpose.msra.mxu0 0.0
  %193 = vmatprep.subr.mxu0 0.0
  %194 = vmatpush1.xpose.msra.mxu0 0.0
  %195 = vmatprep.subr.mxu0 0.0
  %196 = vmatpush1.xpose.msra.mxu0 0.0
  %197 = vmatprep.subr.mxu0 0.0
  %198 = vmatpush1.xpose.msra.mxu0 0.0
  %199 = vmatprep.subr.mxu0 0.0
  %200 = vmatpush1.xpose.msra.mxu0 0.0
  %201 = vmatprep.subr.mxu0 0.0
  %202 = vmatpush1.xpose.msra.mxu0 0.0
  %203 = vmatprep.subr.mxu0 0.0
  %204 = vmatpush1.xpose.msra.mxu0 0.0
  %205 = vmatprep.subr.mxu0 0.0
  %206 = vmatpush1.xpose.msra.mxu0 0.0
  %207 = vmatprep.subr.mxu0 0.0
  %208 = vmatpush1.xpose.msra.mxu0 0.0
  %209 = vmatprep.subr.mxu0 0.0
  %210 = vmatpush1.xpose.msra.mxu0 0.0
  %v211 = vand.u32 %v22, 4294901760
  %212 = vmatprep.subr.mxu0 %v211
  %v213 = vand.u32 %v21, 4294901760
  %214 = vmatpush1.xpose.msra.mxu0 %v213
  %v215 = vand.u32 %v18, 4294901760
  %216 = vmatprep.subr.mxu0 %v215
  %v217 = vand.u32 %v17, 4294901760
  %218 = vmatpush1.xpose.msra.mxu0 %v217
  %219 = vmatprep.subr.mxu0 0.0
  %220 = vmatpush2.xpose.msra.mxu0 0.0
  %221 = vmatprep.subr.mxu0 0.0
  %222 = vmatpush2.xpose.msra.mxu0 0.0
  %223 = vmatprep.subr.mxu0 0.0
  %224 = vmatpush2.xpose.msra.mxu0 0.0
  %225 = vmatprep.subr.mxu0 0.0
  %226 = vmatpush2.xpose.msra.mxu0 0.0
  %227 = vmatprep.subr.mxu0 0.0
  %228 = vmatpush2.xpose.msra.mxu0 0.0
  %229 = vmatprep.subr.mxu0 0.0
  %230 = vmatpush2.xpose.msra.mxu0 0.0
  %231 = vmatprep.subr.mxu0 0.0
  %232 = vmatpush2.xpose.msra.mxu0 0.0
  %233 = vmatprep.subr.mxu0 0.0
  %234 = vmatpush2.xpose.msra.mxu0 0.0
  %235 = vmatprep.subr.mxu0 0.0
  %236 = vmatpush2.xpose.msra.mxu0 0.0
  %237 = vmatprep.subr.mxu0 0.0
  %238 = vmatpush2.xpose.msra.mxu0 0.0
  %239 = vmatprep.subr.mxu0 0.0
  %240 = vmatpush2.xpose.msra.mxu0 0.0
  %241 = vmatprep.subr.mxu0 0.0
  %242 = vmatpush2.xpose.msra.mxu0 0.0
  %243 = vmatprep.subr.mxu0 0.0
  %244 = vmatpush2.xpose.msra.mxu0 0.0
  %245 = vmatprep.subr.mxu0 0.0
  %246 = vmatpush2.xpose.msra.mxu0 0.0
  %247 = vmatprep.subr.mxu0 0.0
  %248 = vmatpush2.xpose.msra.mxu0 0.0
  %249 = vmatprep.subr.mxu0 0.0
  %250 = vmatpush2.xpose.msra.mxu0 0.0
  %v251 = vand.u32 %v110, 4294901760
  %v252 = vsub.f32 %v110, %v251
  %v253 = vand.u32 %v252, 4294901760
  %v254 = vsub.f32 %v252, %v253
  %v255 = vand.u32 %v254, 4294901760
  %256 = vmatprep.mubr.f32.mxu0 %v255
  %v257 = vand.u32 %v108, 4294901760
  %v258 = vsub.f32 %v108, %v257
  %v259 = vand.u32 %v258, 4294901760
  %v260 = vsub.f32 %v258, %v259
  %v261 = vand.u32 %v260, 4294901760
  %262 = vmatmul.mubr.f32.gmra.mxu0 %v261
  %v263 = vpop.f32.mrf.mxu0
  %v264 = vadd.f32 0.0, %v263
  %v265 = vpop.f32.mrf.mxu0
  %v266 = vand.u32 %v116, 4294901760
  %v267 = vsub.f32 %v116, %v266
  %v268 = vand.u32 %v267, 4294901760
  %v269 = vsub.f32 %v267, %v268
  %v270 = vand.u32 %v269, 4294901760
  %271 = vmatprep.mubr.f32.mxu0 %v270
  %v272 = vand.u32 %v115, 4294901760
  %v273 = vsub.f32 %v115, %v272
  %v274 = vand.u32 %v273, 4294901760
  %v275 = vsub.f32 %v273, %v274
  %v276 = vand.u32 %v275, 4294901760
  %277 = vmatmul.mubr.f32.gmra.mxu0 %v276
  %v278 = vpop.f32.mrf.mxu0
  %v279 = vadd.f32 0.0, %v278
  %v280 = vpop.f32.mrf.mxu0
  %281 = vdwg.mxu0
  %282 = vmatprep.subr.mxu0 0.0
  %283 = vmatpush1.xpose.msra.mxu0 0.0
  %284 = vmatprep.subr.mxu0 0.0
  %285 = vmatpush1.xpose.msra.mxu0 0.0
  %286 = vmatprep.subr.mxu0 0.0
  %287 = vmatpush1.xpose.msra.mxu0 0.0
  %288 = vmatprep.subr.mxu0 0.0
  %289 = vmatpush1.xpose.msra.mxu0 0.0
  %290 = vmatprep.subr.mxu0 0.0
  %291 = vmatpush1.xpose.msra.mxu0 0.0
  %292 = vmatprep.subr.mxu0 0.0
  %293 = vmatpush1.xpose.msra.mxu0 0.0
  %294 = vmatprep.subr.mxu0 0.0
  %295 = vmatpush1.xpose.msra.mxu0 0.0
  %296 = vmatprep.subr.mxu0 0.0
  %297 = vmatpush1.xpose.msra.mxu0 0.0
  %298 = vmatprep.subr.mxu0 0.0
  %299 = vmatpush1.xpose.msra.mxu0 0.0
  %300 = vmatprep.subr.mxu0 0.0
  %301 = vmatpush1.xpose.msra.mxu0 0.0
  %302 = vmatprep.subr.mxu0 0.0
  %303 = vmatpush1.xpose.msra.mxu0 0.0
  %304 = vmatprep.subr.mxu0 0.0
  %305 = vmatpush1.xpose.msra.mxu0 0.0
  %306 = vmatprep.subr.mxu0 0.0
  %307 = vmatpush1.xpose.msra.mxu0 0.0
  %308 = vmatprep.subr.mxu0 0.0
  %309 = vmatpush1.xpose.msra.mxu0 0.0
  %v310 = vand.u32 %v22, 4294901760
  %v311 = vsub.f32 %v22, %v310
  %v312 = vand.u32 %v311, 4294901760
  %v313 = vsub.f32 %v311, %v312
  %v314 = vand.u32 %v313, 4294901760
  %315 = vmatprep.subr.mxu0 %v314
  %v316 = vand.u32 %v21, 4294901760
  %v317 = vsub.f32 %v21, %v316
  %v318 = vand.u32 %v317, 4294901760
  %v319 = vsub.f32 %v317, %v318
  %v320 = vand.u32 %v319, 4294901760
  %321 = vmatpush1.xpose.msra.mxu0 %v320
  %v322 = vand.u32 %v18, 4294901760
  %v323 = vsub.f32 %v18, %v322
  %v324 = vand.u32 %v323, 4294901760
  %v325 = vsub.f32 %v323, %v324
  %v326 = vand.u32 %v325, 4294901760
  %327 = vmatprep.subr.mxu0 %v326
  %v328 = vand.u32 %v17, 4294901760
  %v329 = vsub.f32 %v17, %v328
  %v330 = vand.u32 %v329, 4294901760
  %v331 = vsub.f32 %v329, %v330
  %v332 = vand.u32 %v331, 4294901760
  %333 = vmatpush1.xpose.msra.mxu0 %v332
  %334 = vmatprep.subr.mxu0 0.0
  %335 = vmatpush2.xpose.msra.mxu0 0.0
  %336 = vmatprep.subr.mxu0 0.0
  %337 = vmatpush2.xpose.msra.mxu0 0.0
  %338 = vmatprep.subr.mxu0 0.0
  %339 = vmatpush2.xpose.msra.mxu0 0.0
  %340 = vmatprep.subr.mxu0 0.0
  %341 = vmatpush2.xpose.msra.mxu0 0.0
  %342 = vmatprep.subr.mxu0 0.0
  %343 = vmatpush2.xpose.msra.mxu0 0.0
  %344 = vmatprep.subr.mxu0 0.0
  %345 = vmatpush2.xpose.msra.mxu0 0.0
  %346 = vmatprep.subr.mxu0 0.0
  %347 = vmatpush2.xpose.msra.mxu0 0.0
  %348 = vmatprep.subr.mxu0 0.0
  %349 = vmatpush2.xpose.msra.mxu0 0.0
  %350 = vmatprep.subr.mxu0 0.0
  %351 = vmatpush2.xpose.msra.mxu0 0.0
  %352 = vmatprep.subr.mxu0 0.0
  %353 = vmatpush2.xpose.msra.mxu0 0.0
  %354 = vmatprep.subr.mxu0 0.0
  %355 = vmatpush2.xpose.msra.mxu0 0.0
  %356 = vmatprep.subr.mxu0 0.0
  %357 = vmatpush2.xpose.msra.mxu0 0.0
  %358 = vmatprep.subr.mxu0 0.0
  %359 = vmatpush2.xpose.msra.mxu0 0.0
  %360 = vmatprep.subr.mxu0 0.0
  %361 = vmatpush2.xpose.msra.mxu0 0.0
  %362 = vmatprep.subr.mxu0 0.0
  %363 = vmatpush2.xpose.msra.mxu0 0.0
  %364 = vmatprep.subr.mxu0 0.0
  %365 = vmatpush2.xpose.msra.mxu0 0.0
  %v366 = vand.u32 %v110, 4294901760
  %367 = vmatprep.mubr.f32.mxu0 %v366
  %v368 = vand.u32 %v108, 4294901760
  %369 = vmatmul.mubr.f32.gmra.mxu0 %v368
  %v370 = vpop.f32.mrf.mxu0
  %v371 = vadd.f32 %v264, %v370
  %v372 = vpop.f32.mrf.mxu0
  %v373 = vand.u32 %v116, 4294901760
  %374 = vmatprep.mubr.f32.mxu0 %v373
  %v375 = vand.u32 %v115, 4294901760
  %376 = vmatmul.mubr.f32.gmra.mxu0 %v375
  %v377 = vpop.f32.mrf.mxu0
  %v378 = vadd.f32 %v279, %v377
  %v379 = vpop.f32.mrf.mxu0
  %380 = vdwg.mxu0
  %381 = vmatprep.subr.mxu0 0.0
  %382 = vmatpush1.xpose.msra.mxu0 0.0
  %383 = vmatprep.subr.mxu0 0.0
  %384 = vmatpush1.xpose.msra.mxu0 0.0
  %385 = vmatprep.subr.mxu0 0.0
  %386 = vmatpush1.xpose.msra.mxu0 0.0
  %387 = vmatprep.subr.mxu0 0.0
  %388 = vmatpush1.xpose.msra.mxu0 0.0
  %389 = vmatprep.subr.mxu0 0.0
  %390 = vmatpush1.xpose.msra.mxu0 0.0
  %391 = vmatprep.subr.mxu0 0.0
  %392 = vmatpush1.xpose.msra.mxu0 0.0
  %393 = vmatprep.subr.mxu0 0.0
  %394 = vmatpush1.xpose.msra.mxu0 0.0
  %395 = vmatprep.subr.mxu0 0.0
  %396 = vmatpush1.xpose.msra.mxu0 0.0
  %397 = vmatprep.subr.mxu0 0.0
  %398 = vmatpush1.xpose.msra.mxu0 0.0
  %399 = vmatprep.subr.mxu0 0.0
  %400 = vmatpush1.xpose.msra.mxu0 0.0
  %401 = vmatprep.subr.mxu0 0.0
  %402 = vmatpush1.xpose.msra.mxu0 0.0
  %403 = vmatprep.subr.mxu0 0.0
  %404 = vmatpush1.xpose.msra.mxu0 0.0
  %405 = vmatprep.subr.mxu0 0.0
  %406 = vmatpush1.xpose.msra.mxu0 0.0
  %407 = vmatprep.subr.mxu0 0.0
  %408 = vmatpush1.xpose.msra.mxu0 0.0
  %v409 = vand.u32 %v22, 4294901760
  %v410 = vsub.f32 %v22, %v409
  %411 = vmatprep.subr.mxu0 %v410
  %v412 = vand.u32 %v21, 4294901760
  %v413 = vsub.f32 %v21, %v412
  %414 = vmatpush1.xpose.msra.mxu0 %v413
  %v415 = vand.u32 %v18, 4294901760
  %v416 = vsub.f32 %v18, %v415
  %417 = vmatprep.subr.mxu0 %v416
  %v418 = vand.u32 %v17, 4294901760
  %v419 = vsub.f32 %v17, %v418
  %420 = vmatpush1.xpose.msra.mxu0 %v419
  %421 = vmatprep.subr.mxu0 0.0
  %422 = vmatpush2.xpose.msra.mxu0 0.0
  %423 = vmatprep.subr.mxu0 0.0
  %424 = vmatpush2.xpose.msra.mxu0 0.0
  %425 = vmatprep.subr.mxu0 0.0
  %426 = vmatpush2.xpose.msra.mxu0 0.0
  %427 = vmatprep.subr.mxu0 0.0
  %428 = vmatpush2.xpose.msra.mxu0 0.0
  %429 = vmatprep.subr.mxu0 0.0
  %430 = vmatpush2.xpose.msra.mxu0 0.0
  %431 = vmatprep.subr.mxu0 0.0
  %432 = vmatpush2.xpose.msra.mxu0 0.0
  %433 = vmatprep.subr.mxu0 0.0
  %434 = vmatpush2.xpose.msra.mxu0 0.0
  %435 = vmatprep.subr.mxu0 0.0
  %436 = vmatpush2.xpose.msra.mxu0 0.0
  %437 = vmatprep.subr.mxu0 0.0
  %438 = vmatpush2.xpose.msra.mxu0 0.0
  %439 = vmatprep.subr.mxu0 0.0
  %440 = vmatpush2.xpose.msra.mxu0 0.0
  %441 = vmatprep.subr.mxu0 0.0
  %442 = vmatpush2.xpose.msra.mxu0 0.0
  %443 = vmatprep.subr.mxu0 0.0
  %444 = vmatpush2.xpose.msra.mxu0 0.0
  %445 = vmatprep.subr.mxu0 0.0
  %446 = vmatpush2.xpose.msra.mxu0 0.0
  %447 = vmatprep.subr.mxu0 0.0
  %448 = vmatpush2.xpose.msra.mxu0 0.0
  %449 = vmatprep.subr.mxu0 0.0
  %450 = vmatpush2.xpose.msra.mxu0 0.0
  %451 = vmatprep.subr.mxu0 0.0
  %452 = vmatpush2.xpose.msra.mxu0 0.0
  %v453 = vand.u32 %v110, 4294901760
  %v454 = vsub.f32 %v110, %v453
  %455 = vmatprep.mubr.f32.mxu0 %v454
  %v456 = vand.u32 %v108, 4294901760
  %v457 = vsub.f32 %v108, %v456
  %458 = vmatmul.mubr.f32.gmra.mxu0 %v457
  %v459 = vpop.f32.mrf.mxu0
  %v460 = vadd.f32 %v371, %v459
  %v461 = vpop.f32.mrf.mxu0
  %v462 = vand.u32 %v116, 4294901760
  %v463 = vsub.f32 %v116, %v462
  %464 = vmatprep.mubr.f32.mxu0 %v463
  %v465 = vand.u32 %v115, 4294901760
  %v466 = vsub.f32 %v115, %v465
  %467 = vmatmul.mubr.f32.gmra.mxu0 %v466
  %v468 = vpop.f32.mrf.mxu0
  %v469 = vadd.f32 %v378, %v468
  %v470 = vpop.f32.mrf.mxu0
  %471 = vdwg.mxu0
  %472 = vmatprep.subr.mxu0 0.0
  %473 = vmatpush1.xpose.msra.mxu0 0.0
  %474 = vmatprep.subr.mxu0 0.0
  %475 = vmatpush1.xpose.msra.mxu0 0.0
  %476 = vmatprep.subr.mxu0 0.0
  %477 = vmatpush1.xpose.msra.mxu0 0.0
  %478 = vmatprep.subr.mxu0 0.0
  %479 = vmatpush1.xpose.msra.mxu0 0.0
  %480 = vmatprep.subr.mxu0 0.0
  %481 = vmatpush1.xpose.msra.mxu0 0.0
  %482 = vmatprep.subr.mxu0 0.0
  %483 = vmatpush1.xpose.msra.mxu0 0.0
  %484 = vmatprep.subr.mxu0 0.0
  %485 = vmatpush1.xpose.msra.mxu0 0.0
  %486 = vmatprep.subr.mxu0 0.0
  %487 = vmatpush1.xpose.msra.mxu0 0.0
  %488 = vmatprep.subr.mxu0 0.0
  %489 = vmatpush1.xpose.msra.mxu0 0.0
  %490 = vmatprep.subr.mxu0 0.0
  %491 = vmatpush1.xpose.msra.mxu0 0.0
  %492 = vmatprep.subr.mxu0 0.0
  %493 = vmatpush1.xpose.msra.mxu0 0.0
  %494 = vmatprep.subr.mxu0 0.0
  %495 = vmatpush1.xpose.msra.mxu0 0.0
  %496 = vmatprep.subr.mxu0 0.0
  %497 = vmatpush1.xpose.msra.mxu0 0.0
  %498 = vmatprep.subr.mxu0 0.0
  %499 = vmatpush1.xpose.msra.mxu0 0.0
  %v500 = vand.u32 %v22, 4294901760
  %501 = vmatprep.subr.mxu0 %v500
  %v502 = vand.u32 %v21, 4294901760
  %503 = vmatpush1.xpose.msra.mxu0 %v502
  %v504 = vand.u32 %v18, 4294901760
  %505 = vmatprep.subr.mxu0 %v504
  %v506 = vand.u32 %v17, 4294901760
  %507 = vmatpush1.xpose.msra.mxu0 %v506
  %508 = vmatprep.subr.mxu0 0.0
  %509 = vmatpush2.xpose.msra.mxu0 0.0
  %510 = vmatprep.subr.mxu0 0.0
  %511 = vmatpush2.xpose.msra.mxu0 0.0
  %512 = vmatprep.subr.mxu0 0.0
  %513 = vmatpush2.xpose.msra.mxu0 0.0
  %514 = vmatprep.subr.mxu0 0.0
  %515 = vmatpush2.xpose.msra.mxu0 0.0
  %516 = vmatprep.subr.mxu0 0.0
  %517 = vmatpush2.xpose.msra.mxu0 0.0
  %518 = vmatprep.subr.mxu0 0.0
  %519 = vmatpush2.xpose.msra.mxu0 0.0
  %520 = vmatprep.subr.mxu0 0.0
  %521 = vmatpush2.xpose.msra.mxu0 0.0
  %522 = vmatprep.subr.mxu0 0.0
  %523 = vmatpush2.xpose.msra.mxu0 0.0
  %524 = vmatprep.subr.mxu0 0.0
  %525 = vmatpush2.xpose.msra.mxu0 0.0
  %526 = vmatprep.subr.mxu0 0.0
  %527 = vmatpush2.xpose.msra.mxu0 0.0
  %528 = vmatprep.subr.mxu0 0.0
  %529 = vmatpush2.xpose.msra.mxu0 0.0
  %530 = vmatprep.subr.mxu0 0.0
  %531 = vmatpush2.xpose.msra.mxu0 0.0
  %532 = vmatprep.subr.mxu0 0.0
  %533 = vmatpush2.xpose.msra.mxu0 0.0
  %534 = vmatprep.subr.mxu0 0.0
  %535 = vmatpush2.xpose.msra.mxu0 0.0
  %536 = vmatprep.subr.mxu0 0.0
  %537 = vmatpush2.xpose.msra.mxu0 0.0
  %538 = vmatprep.subr.mxu0 0.0
  %539 = vmatpush2.xpose.msra.mxu0 0.0
  %v540 = vand.u32 %v110, 4294901760
  %v541 = vsub.f32 %v110, %v540
  %v542 = vand.u32 %v541, 4294901760
  %543 = vmatprep.mubr.f32.mxu0 %v542
  %v544 = vand.u32 %v108, 4294901760
  %v545 = vsub.f32 %v108, %v544
  %v546 = vand.u32 %v545, 4294901760
  %547 = vmatmul.mubr.f32.gmra.mxu0 %v546
  %v548 = vpop.f32.mrf.mxu0
  %v549 = vadd.f32 %v460, %v548
  %v550 = vpop.f32.mrf.mxu0
  %v551 = vand.u32 %v116, 4294901760
  %v552 = vsub.f32 %v116, %v551
  %v553 = vand.u32 %v552, 4294901760
  %554 = vmatprep.mubr.f32.mxu0 %v553
  %v555 = vand.u32 %v115, 4294901760
  %v556 = vsub.f32 %v115, %v555
  %v557 = vand.u32 %v556, 4294901760
  %558 = vmatmul.mubr.f32.gmra.mxu0 %v557
  %v559 = vpop.f32.mrf.mxu0
  %v560 = vadd.f32 %v469, %v559
  %v561 = vpop.f32.mrf.mxu0
  %562 = vdwg.mxu0
  %563 = vmatprep.subr.mxu0 0.0
  %564 = vmatpush1.xpose.msra.mxu0 0.0
  %565 = vmatprep.subr.mxu0 0.0
  %566 = vmatpush1.xpose.msra.mxu0 0.0
  %567 = vmatprep.subr.mxu0 0.0
  %568 = vmatpush1.xpose.msra.mxu0 0.0
  %569 = vmatprep.subr.mxu0 0.0
  %570 = vmatpush1.xpose.msra.mxu0 0.0
  %571 = vmatprep.subr.mxu0 0.0
  %572 = vmatpush1.xpose.msra.mxu0 0.0
  %573 = vmatprep.subr.mxu0 0.0
  %574 = vmatpush1.xpose.msra.mxu0 0.0
  %575 = vmatprep.subr.mxu0 0.0
  %576 = vmatpush1.xpose.msra.mxu0 0.0
  %577 = vmatprep.subr.mxu0 0.0
  %578 = vmatpush1.xpose.msra.mxu0 0.0
  %579 = vmatprep.subr.mxu0 0.0
  %580 = vmatpush1.xpose.msra.mxu0 0.0
  %581 = vmatprep.subr.mxu0 0.0
  %582 = vmatpush1.xpose.msra.mxu0 0.0
  %583 = vmatprep.subr.mxu0 0.0
  %584 = vmatpush1.xpose.msra.mxu0 0.0
  %585 = vmatprep.subr.mxu0 0.0
  %586 = vmatpush1.xpose.msra.mxu0 0.0
  %587 = vmatprep.subr.mxu0 0.0
  %588 = vmatpush1.xpose.msra.mxu0 0.0
  %589 = vmatprep.subr.mxu0 0.0
  %590 = vmatpush1.xpose.msra.mxu0 0.0
  %v591 = vand.u32 %v22, 4294901760
  %v592 = vsub.f32 %v22, %v591
  %v593 = vand.u32 %v592, 4294901760
  %594 = vmatprep.subr.mxu0 %v593
  %v595 = vand.u32 %v21, 4294901760
  %v596 = vsub.f32 %v21, %v595
  %v597 = vand.u32 %v596, 4294901760
  %598 = vmatpush1.xpose.msra.mxu0 %v597
  %v599 = vand.u32 %v18, 4294901760
  %v600 = vsub.f32 %v18, %v599
  %v601 = vand.u32 %v600, 4294901760
  %602 = vmatprep.subr.mxu0 %v601
  %v603 = vand.u32 %v17, 4294901760
  %v604 = vsub.f32 %v17, %v603
  %v605 = vand.u32 %v604, 4294901760
  %606 = vmatpush1.xpose.msra.mxu0 %v605
  %607 = vmatprep.subr.mxu0 0.0
  %608 = vmatpush2.xpose.msra.mxu0 0.0
  %609 = vmatprep.subr.mxu0 0.0
  %610 = vmatpush2.xpose.msra.mxu0 0.0
  %611 = vmatprep.subr.mxu0 0.0
  %612 = vmatpush2.xpose.msra.mxu0 0.0
  %613 = vmatprep.subr.mxu0 0.0
  %614 = vmatpush2.xpose.msra.mxu0 0.0
  %615 = vmatprep.subr.mxu0 0.0
  %616 = vmatpush2.xpose.msra.mxu0 0.0
  %617 = vmatprep.subr.mxu0 0.0
  %618 = vmatpush2.xpose.msra.mxu0 0.0
  %619 = vmatprep.subr.mxu0 0.0
  %620 = vmatpush2.xpose.msra.mxu0 0.0
  %621 = vmatprep.subr.mxu0 0.0
  %622 = vmatpush2.xpose.msra.mxu0 0.0
  %623 = vmatprep.subr.mxu0 0.0
  %624 = vmatpush2.xpose.msra.mxu0 0.0
  %625 = vmatprep.subr.mxu0 0.0
  %626 = vmatpush2.xpose.msra.mxu0 0.0
  %627 = vmatprep.subr.mxu0 0.0
  %628 = vmatpush2.xpose.msra.mxu0 0.0
  %629 = vmatprep.subr.mxu0 0.0
  %630 = vmatpush2.xpose.msra.mxu0 0.0
  %631 = vmatprep.subr.mxu0 0.0
  %632 = vmatpush2.xpose.msra.mxu0 0.0
  %633 = vmatprep.subr.mxu0 0.0
  %634 = vmatpush2.xpose.msra.mxu0 0.0
  %635 = vmatprep.subr.mxu0 0.0
  %636 = vmatpush2.xpose.msra.mxu0 0.0
  %637 = vmatprep.subr.mxu0 0.0
  %638 = vmatpush2.xpose.msra.mxu0 0.0
  %v639 = vand.u32 %v110, 4294901760
  %640 = vmatprep.mubr.f32.mxu0 %v639
  %v641 = vand.u32 %v108, 4294901760
  %642 = vmatmul.mubr.f32.gmra.mxu0 %v641
  %v643 = vpop.f32.mrf.mxu0
  %v644 = vadd.f32 %v549, %v643
  %v645 = vpop.f32.mrf.mxu0
  %v646 = vand.u32 %v116, 4294901760
  %647 = vmatprep.mubr.f32.mxu0 %v646
  %v648 = vand.u32 %v115, 4294901760
  %649 = vmatmul.mubr.f32.gmra.mxu0 %v648
  %v650 = vpop.f32.mrf.mxu0
  %v651 = vadd.f32 %v560, %v650
  %v652 = vpop.f32.mrf.mxu0
  %653 = vdwg.mxu0
  %654 = vmatprep.subr.mxu0 0.0
  %655 = vmatpush1.xpose.msra.mxu0 0.0
  %656 = vmatprep.subr.mxu0 0.0
  %657 = vmatpush1.xpose.msra.mxu0 0.0
  %658 = vmatprep.subr.mxu0 0.0
  %659 = vmatpush1.xpose.msra.mxu0 0.0
  %660 = vmatprep.subr.mxu0 0.0
  %661 = vmatpush1.xpose.msra.mxu0 0.0
  %662 = vmatprep.subr.mxu0 0.0
  %663 = vmatpush1.xpose.msra.mxu0 0.0
  %664 = vmatprep.subr.mxu0 0.0
  %665 = vmatpush1.xpose.msra.mxu0 0.0
  %666 = vmatprep.subr.mxu0 0.0
  %667 = vmatpush1.xpose.msra.mxu0 0.0
  %668 = vmatprep.subr.mxu0 0.0
  %669 = vmatpush1.xpose.msra.mxu0 0.0
  %670 = vmatprep.subr.mxu0 0.0
  %671 = vmatpush1.xpose.msra.mxu0 0.0
  %672 = vmatprep.subr.mxu0 0.0
  %673 = vmatpush1.xpose.msra.mxu0 0.0
  %674 = vmatprep.subr.mxu0 0.0
  %675 = vmatpush1.xpose.msra.mxu0 0.0
  %676 = vmatprep.subr.mxu0 0.0
  %677 = vmatpush1.xpose.msra.mxu0 0.0
  %678 = vmatprep.subr.mxu0 0.0
  %679 = vmatpush1.xpose.msra.mxu0 0.0
  %680 = vmatprep.subr.mxu0 0.0
  %681 = vmatpush1.xpose.msra.mxu0 0.0
  %v682 = vand.u32 %v22, 4294901760
  %683 = vmatprep.subr.mxu0 %v682
  %v684 = vand.u32 %v21, 4294901760
  %685 = vmatpush1.xpose.msra.mxu0 %v684
  %v686 = vand.u32 %v18, 4294901760
  %687 = vmatprep.subr.mxu0 %v686
  %v688 = vand.u32 %v17, 4294901760
  %689 = vmatpush1.xpose.msra.mxu0 %v688
  %690 = vmatprep.subr.mxu0 0.0
  %691 = vmatpush2.xpose.msra.mxu0 0.0
  %692 = vmatprep.subr.mxu0 0.0
  %693 = vmatpush2.xpose.msra.mxu0 0.0
  %694 = vmatprep.subr.mxu0 0.0
  %695 = vmatpush2.xpose.msra.mxu0 0.0
  %696 = vmatprep.subr.mxu0 0.0
  %697 = vmatpush2.xpose.msra.mxu0 0.0
  %698 = vmatprep.subr.mxu0 0.0
  %699 = vmatpush2.xpose.msra.mxu0 0.0
  %700 = vmatprep.subr.mxu0 0.0
  %701 = vmatpush2.xpose.msra.mxu0 0.0
  %702 = vmatprep.subr.mxu0 0.0
  %703 = vmatpush2.xpose.msra.mxu0 0.0
  %704 = vmatprep.subr.mxu0 0.0
  %705 = vmatpush2.xpose.msra.mxu0 0.0
  %706 = vmatprep.subr.mxu0 0.0
  %707 = vmatpush2.xpose.msra.mxu0 0.0
  %708 = vmatprep.subr.mxu0 0.0
  %709 = vmatpush2.xpose.msra.mxu0 0.0
  %710 = vmatprep.subr.mxu0 0.0
  %711 = vmatpush2.xpose.msra.mxu0 0.0
  %712 = vmatprep.subr.mxu0 0.0
  %713 = vmatpush2.xpose.msra.mxu0 0.0
  %714 = vmatprep.subr.mxu0 0.0
  %715 = vmatpush2.xpose.msra.mxu0 0.0
  %716 = vmatprep.subr.mxu0 0.0
  %717 = vmatpush2.xpose.msra.mxu0 0.0
  %718 = vmatprep.subr.mxu0 0.0
  %719 = vmatpush2.xpose.msra.mxu0 0.0
  %720 = vmatprep.subr.mxu0 0.0
  %721 = vmatpush2.xpose.msra.mxu0 0.0
  %v722 = vand.u32 %v110, 4294901760
  %723 = vmatprep.mubr.f32.mxu0 %v722
  %v724 = vand.u32 %v108, 4294901760
  %725 = vmatmul.mubr.f32.gmra.mxu0 %v724
  %v726 = vpop.f32.mrf.mxu0
  %v727 = vadd.f32 %v644, %v726
  %v728 = vpop.f32.mrf.mxu0
  %v729 = vand.u32 %v116, 4294901760
  %730 = vmatprep.mubr.f32.mxu0 %v729
  %v731 = vand.u32 %v115, 4294901760
  %732 = vmatmul.mubr.f32.gmra.mxu0 %v731
  %v733 = vpop.f32.mrf.mxu0
  %v734 = vadd.f32 %v651, %v733
  %v735 = vpop.f32.mrf.mxu0
  %736 = vdwg.mxu0
  %v737 = vmul.f32 %v727, 0.00390625
  %v738 = vmul.f32 %v734, 0.00390625
  %v739 = vmul.f32 %v737, %v737
  %v740 = vmul.f32 %v738, %v738
  %vm741 = vcmask 130048
  %v742 = vsel %vm741, %v739, 0.0
  %743 = vadd.xlane.f32.xlu0 %v742
  %v744 = vpop.xlane.xlu0 %743
  %v745 = vsel %vm741, %v740, 0.0
  %746 = vadd.xlane.f32.xlu0 %v745
  %v747 = vpop.xlane.xlu0 %746
  %v748 = vrsqrt.pop %v744
  %v749 = vmul.f32 %v744, %v748
  %vm750 = vcmp.eq.f32.partialorder %v744, inf
  %v751 = vsel %vm750, %v744, %v749
  %vm752 = vcmp.eq.f32.partialorder %v744, 0.0
  %v753 = vand.u32 %v744, 2147483648
  %v754 = vsel %vm752, %v753, %v751
  %v755 = vrsqrt.pop %v747
  %v756 = vmul.f32 %v747, %v755
  %vm757 = vcmp.eq.f32.partialorder %v747, inf
  %v758 = vsel %vm757, %v747, %v756
  %vm759 = vcmp.eq.f32.partialorder %v747, 0.0
  %v760 = vand.u32 %v747, 2147483648
  %v761 = vsel %vm759, %v760, %v758
  %v762 = vmul.f32 %v754, %v161
  %v763 = vmul.f32 %v754, %v168
  %v764 = vmul.f32 %v761, %v161
  %v765 = vmul.f32 %v761, %v168
  %v766 = vadd.f32 %v17, %v762
  %v767 = vadd.f32 %v18, %v763
  %v768 = vadd.f32 %v21, %v764
  %v769 = vadd.f32 %v22, %v765
  %v770 = vadd.f32 %v766, %v767
  %771 = vadd.xlane.f32.xlu0 %v770
  %v772 = vpop.xlane.xlu0 %771
  %v773 = vadd.f32 %v768, %v769
  %774 = vadd.xlane.f32.xlu0 %v773
  %v775 = vpop.xlane.xlu0 %774
  %v776 = vmul.f32 %v772, 0.00390625
  %v777 = vmul.f32 %v775, 0.00390625
  %v778 = vmul.f32 %v766, %v766
  %v779 = vmul.f32 %v767, %v767
  %v780 = vmul.f32 %v768, %v768
  %v781 = vmul.f32 %v769, %v769
  %v782 = vadd.f32 %v778, %v779
  %783 = vadd.xlane.f32.xlu0 %v782
  %v784 = vpop.xlane.xlu0 %783
  %v785 = vadd.f32 %v780, %v781
  %786 = vadd.xlane.f32.xlu0 %v785
  %v787 = vpop.xlane.xlu0 %786
  %v788 = vmul.f32 %v784, 0.00390625
  %v789 = vmul.f32 %v787, 0.00390625
  %v790 = vmul.f32 %v776, %v776
  %v791 = vmul.f32 %v777, %v777
  %v792 = vsub.f32 %v788, %v790
  %v793 = vsub.f32 %v789, %v791
  %v794 = vmax.f32 %v792, 0.0
  %v795 = vmax.f32 %v793, 0.0
  %v796 = vsub.f32 %v766, %v776
  %v797 = vsub.f32 %v767, %v776
  %v798 = vsub.f32 %v768, %v777
  %v799 = vsub.f32 %v769, %v777
  %v800 = vadd.f32 %v794, 1e-05
  %v801 = vadd.f32 %v795, 1e-05
  %v802 = vrsqrt.pop %v800
  %v803 = vrsqrt.pop %v801
  %v804 = vmul.f32 %v796, %v802
  %v805 = vmul.f32 %v797, %v802
  %v806 = vmul.f32 %v798, %v803
  %v807 = vmul.f32 %v799, %v803
  %809 = vset.pattern.permute.xlu0 0
  %810 = vperm.xlu0 %809, %v25
  %v811 = vpop.permute.xlu0 %810
  %814 = vset.pattern.permute.xlu0 0
  %815 = vperm.xlu0 %814, %v26
  %v816 = vpop.permute.xlu0 %815
  %v818 = vmul.f32 %v804, %v811
  %v819 = vmul.f32 %v805, %v811
  %v820 = vmul.f32 %v806, %v816
  %v821 = vmul.f32 %v807, %v816
  %822 = vset.pattern.permute.xlu0 1
  %823 = vperm.xlu0 %822, %v25
  %v824 = vpop.permute.xlu0 %823
  %826 = vset.pattern.permute.xlu0 1
  %827 = vperm.xlu0 %826, %v26
  %v828 = vpop.permute.xlu0 %827
  %v830 = vadd.f32 %v818, %v824
  %v831 = vadd.f32 %v819, %v824
  %v832 = vadd.f32 %v820, %v828
  %v833 = vadd.f32 %v821, %v828
  %834 = vst [vmem:[%s4] sm:$0xff] %v830
  %835 = vst [vmem:[%s4 + $0x8] sm:$0xff] %v831
  %836 = vst [vmem:[%s4 + $0x20] sm:$0xff] %v832
  %837 = vst [vmem:[%s4 + $0x28] sm:$0xff] %v833
  %838 = vmatprep.subr.mxu0 0.0
  %839 = vmatpush1.xpose.msra.mxu0 0.0
  %840 = vmatprep.subr.mxu0 0.0
  %841 = vmatpush1.xpose.msra.mxu0 0.0
  %842 = vmatprep.subr.mxu0 0.0
  %843 = vmatpush1.xpose.msra.mxu0 0.0
  %844 = vmatprep.subr.mxu0 0.0
  %845 = vmatpush1.xpose.msra.mxu0 0.0
  %846 = vmatprep.subr.mxu0 0.0
  %847 = vmatpush1.xpose.msra.mxu0 0.0
  %848 = vmatprep.subr.mxu0 0.0
  %849 = vmatpush1.xpose.msra.mxu0 0.0
  %850 = vmatprep.subr.mxu0 0.0
  %851 = vmatpush1.xpose.msra.mxu0 0.0
  %852 = vmatprep.subr.mxu0 0.0
  %853 = vmatpush1.xpose.msra.mxu0 0.0
  %854 = vmatprep.subr.mxu0 0.0
  %855 = vmatpush1.xpose.msra.mxu0 0.0
  %856 = vmatprep.subr.mxu0 0.0
  %857 = vmatpush1.xpose.msra.mxu0 0.0
  %858 = vmatprep.subr.mxu0 0.0
  %859 = vmatpush1.xpose.msra.mxu0 0.0
  %860 = vmatprep.subr.mxu0 0.0
  %861 = vmatpush1.xpose.msra.mxu0 0.0
  %862 = vmatprep.subr.mxu0 0.0
  %863 = vmatpush1.xpose.msra.mxu0 0.0
  %864 = vmatprep.subr.mxu0 0.0
  %865 = vmatpush1.xpose.msra.mxu0 0.0
  %v866 = vand.u32 %v24, 4294901760
  %867 = vmatprep.subr.mxu0 %v866
  %v868 = vand.u32 %v23, 4294901760
  %869 = vmatpush1.xpose.msra.mxu0 %v868
  %v870 = vand.u32 %v20, 4294901760
  %871 = vmatprep.subr.mxu0 %v870
  %v872 = vand.u32 %v19, 4294901760
  %873 = vmatpush1.xpose.msra.mxu0 %v872
  %874 = vmatprep.subr.mxu0 0.0
  %875 = vmatpush2.xpose.msra.mxu0 0.0
  %876 = vmatprep.subr.mxu0 0.0
  %877 = vmatpush2.xpose.msra.mxu0 0.0
  %878 = vmatprep.subr.mxu0 0.0
  %879 = vmatpush2.xpose.msra.mxu0 0.0
  %880 = vmatprep.subr.mxu0 0.0
  %881 = vmatpush2.xpose.msra.mxu0 0.0
  %882 = vmatprep.subr.mxu0 0.0
  %883 = vmatpush2.xpose.msra.mxu0 0.0
  %884 = vmatprep.subr.mxu0 0.0
  %885 = vmatpush2.xpose.msra.mxu0 0.0
  %886 = vmatprep.subr.mxu0 0.0
  %887 = vmatpush2.xpose.msra.mxu0 0.0
  %888 = vmatprep.subr.mxu0 0.0
  %889 = vmatpush2.xpose.msra.mxu0 0.0
  %890 = vmatprep.subr.mxu0 0.0
  %891 = vmatpush2.xpose.msra.mxu0 0.0
  %892 = vmatprep.subr.mxu0 0.0
  %893 = vmatpush2.xpose.msra.mxu0 0.0
  %894 = vmatprep.subr.mxu0 0.0
  %895 = vmatpush2.xpose.msra.mxu0 0.0
  %896 = vmatprep.subr.mxu0 0.0
  %897 = vmatpush2.xpose.msra.mxu0 0.0
  %898 = vmatprep.subr.mxu0 0.0
  %899 = vmatpush2.xpose.msra.mxu0 0.0
  %900 = vmatprep.subr.mxu0 0.0
  %901 = vmatpush2.xpose.msra.mxu0 0.0
  %902 = vmatprep.subr.mxu0 0.0
  %903 = vmatpush2.xpose.msra.mxu0 0.0
  %904 = vmatprep.subr.mxu0 0.0
  %905 = vmatpush2.xpose.msra.mxu0 0.0
  %v906 = vand.u32 %v114, 4294901760
  %v907 = vsub.f32 %v114, %v906
  %v908 = vand.u32 %v907, 4294901760
  %v909 = vsub.f32 %v907, %v908
  %v910 = vand.u32 %v909, 4294901760
  %911 = vmatprep.mubr.f32.mxu0 %v910
  %v912 = vand.u32 %v112, 4294901760
  %v913 = vsub.f32 %v112, %v912
  %v914 = vand.u32 %v913, 4294901760
  %v915 = vsub.f32 %v913, %v914
  %v916 = vand.u32 %v915, 4294901760
  %917 = vmatmul.mubr.f32.gmra.mxu0 %v916
  %v918 = vpop.f32.mrf.mxu0
  %v919 = vadd.f32 0.0, %v918
  %v920 = vpop.f32.mrf.mxu0
  %v921 = vand.u32 %v118, 4294901760
  %v922 = vsub.f32 %v118, %v921
  %v923 = vand.u32 %v922, 4294901760
  %v924 = vsub.f32 %v922, %v923
  %v925 = vand.u32 %v924, 4294901760
  %926 = vmatprep.mubr.f32.mxu0 %v925
  %v927 = vand.u32 %v117, 4294901760
  %v928 = vsub.f32 %v117, %v927
  %v929 = vand.u32 %v928, 4294901760
  %v930 = vsub.f32 %v928, %v929
  %v931 = vand.u32 %v930, 4294901760
  %932 = vmatmul.mubr.f32.gmra.mxu0 %v931
  %v933 = vpop.f32.mrf.mxu0
  %v934 = vadd.f32 0.0, %v933
  %v935 = vpop.f32.mrf.mxu0
  %936 = vdwg.mxu0
  %937 = vmatprep.subr.mxu0 0.0
  %938 = vmatpush1.xpose.msra.mxu0 0.0
  %939 = vmatprep.subr.mxu0 0.0
  %940 = vmatpush1.xpose.msra.mxu0 0.0
  %941 = vmatprep.subr.mxu0 0.0
  %942 = vmatpush1.xpose.msra.mxu0 0.0
  %943 = vmatprep.subr.mxu0 0.0
  %944 = vmatpush1.xpose.msra.mxu0 0.0
  %945 = vmatprep.subr.mxu0 0.0
  %946 = vmatpush1.xpose.msra.mxu0 0.0
  %947 = vmatprep.subr.mxu0 0.0
  %948 = vmatpush1.xpose.msra.mxu0 0.0
  %949 = vmatprep.subr.mxu0 0.0
  %950 = vmatpush1.xpose.msra.mxu0 0.0
  %951 = vmatprep.subr.mxu0 0.0
  %952 = vmatpush1.xpose.msra.mxu0 0.0
  %953 = vmatprep.subr.mxu0 0.0
  %954 = vmatpush1.xpose.msra.mxu0 0.0
  %955 = vmatprep.subr.mxu0 0.0
  %956 = vmatpush1.xpose.msra.mxu0 0.0
  %957 = vmatprep.subr.mxu0 0.0
  %958 = vmatpush1.xpose.msra.mxu0 0.0
  %959 = vmatprep.subr.mxu0 0.0
  %960 = vmatpush1.xpose.msra.mxu0 0.0
  %961 = vmatprep.subr.mxu0 0.0
  %962 = vmatpush1.xpose.msra.mxu0 0.0
  %963 = vmatprep.subr.mxu0 0.0
  %964 = vmatpush1.xpose.msra.mxu0 0.0
  %v965 = vand.u32 %v24, 4294901760
  %v966 = vsub.f32 %v24, %v965
  %v967 = vand.u32 %v966, 4294901760
  %v968 = vsub.f32 %v966, %v967
  %v969 = vand.u32 %v968, 4294901760
  %970 = vmatprep.subr.mxu0 %v969
  %v971 = vand.u32 %v23, 4294901760
  %v972 = vsub.f32 %v23, %v971
  %v973 = vand.u32 %v972, 4294901760
  %v974 = vsub.f32 %v972, %v973
  %v975 = vand.u32 %v974, 4294901760
  %976 = vmatpush1.xpose.msra.mxu0 %v975
  %v977 = vand.u32 %v20, 4294901760
  %v978 = vsub.f32 %v20, %v977
  %v979 = vand.u32 %v978, 4294901760
  %v980 = vsub.f32 %v978, %v979
  %v981 = vand.u32 %v980, 4294901760
  %982 = vmatprep.subr.mxu0 %v981
  %v983 = vand.u32 %v19, 4294901760
  %v984 = vsub.f32 %v19, %v983
  %v985 = vand.u32 %v984, 4294901760
  %v986 = vsub.f32 %v984, %v985
  %v987 = vand.u32 %v986, 4294901760
  %988 = vmatpush1.xpose.msra.mxu0 %v987
  %989 = vmatprep.subr.mxu0 0.0
  %990 = vmatpush2.xpose.msra.mxu0 0.0
  %991 = vmatprep.subr.mxu0 0.0
  %992 = vmatpush2.xpose.msra.mxu0 0.0
  %993 = vmatprep.subr.mxu0 0.0
  %994 = vmatpush2.xpose.msra.mxu0 0.0
  %995 = vmatprep.subr.mxu0 0.0
  %996 = vmatpush2.xpose.msra.mxu0 0.0
  %997 = vmatprep.subr.mxu0 0.0
  %998 = vmatpush2.xpose.msra.mxu0 0.0
  %999 = vmatprep.subr.mxu0 0.0
  %1000 = vmatpush2.xpose.msra.mxu0 0.0
  %1001 = vmatprep.subr.mxu0 0.0
  %1002 = vmatpush2.xpose.msra.mxu0 0.0
  %1003 = vmatprep.subr.mxu0 0.0
  %1004 = vmatpush2.xpose.msra.mxu0 0.0
  %1005 = vmatprep.subr.mxu0 0.0
  %1006 = vmatpush2.xpose.msra.mxu0 0.0
  %1007 = vmatprep.subr.mxu0 0.0
  %1008 = vmatpush2.xpose.msra.mxu0 0.0
  %1009 = vmatprep.subr.mxu0 0.0
  %1010 = vmatpush2.xpose.msra.mxu0 0.0
  %1011 = vmatprep.subr.mxu0 0.0
  %1012 = vmatpush2.xpose.msra.mxu0 0.0
  %1013 = vmatprep.subr.mxu0 0.0
  %1014 = vmatpush2.xpose.msra.mxu0 0.0
  %1015 = vmatprep.subr.mxu0 0.0
  %1016 = vmatpush2.xpose.msra.mxu0 0.0
  %1017 = vmatprep.subr.mxu0 0.0
  %1018 = vmatpush2.xpose.msra.mxu0 0.0
  %1019 = vmatprep.subr.mxu0 0.0
  %1020 = vmatpush2.xpose.msra.mxu0 0.0
  %v1021 = vand.u32 %v114, 4294901760
  %1022 = vmatprep.mubr.f32.mxu0 %v1021
  %v1023 = vand.u32 %v112, 4294901760
  %1024 = vmatmul.mubr.f32.gmra.mxu0 %v1023
  %v1025 = vpop.f32.mrf.mxu0
  %v1026 = vadd.f32 %v919, %v1025
  %v1027 = vpop.f32.mrf.mxu0
  %v1028 = vand.u32 %v118, 4294901760
  %1029 = vmatprep.mubr.f32.mxu0 %v1028
  %v1030 = vand.u32 %v117, 4294901760
  %1031 = vmatmul.mubr.f32.gmra.mxu0 %v1030
  %v1032 = vpop.f32.mrf.mxu0
  %v1033 = vadd.f32 %v934, %v1032
  %v1034 = vpop.f32.mrf.mxu0
  %1035 = vdwg.mxu0
  %1036 = vmatprep.subr.mxu0 0.0
  %1037 = vmatpush1.xpose.msra.mxu0 0.0
  %1038 = vmatprep.subr.mxu0 0.0
  %1039 = vmatpush1.xpose.msra.mxu0 0.0
  %1040 = vmatprep.subr.mxu0 0.0
  %1041 = vmatpush1.xpose.msra.mxu0 0.0
  %1042 = vmatprep.subr.mxu0 0.0
  %1043 = vmatpush1.xpose.msra.mxu0 0.0
  %1044 = vmatprep.subr.mxu0 0.0
  %1045 = vmatpush1.xpose.msra.mxu0 0.0
  %1046 = vmatprep.subr.mxu0 0.0
  %1047 = vmatpush1.xpose.msra.mxu0 0.0
  %1048 = vmatprep.subr.mxu0 0.0
  %1049 = vmatpush1.xpose.msra.mxu0 0.0
  %1050 = vmatprep.subr.mxu0 0.0
  %1051 = vmatpush1.xpose.msra.mxu0 0.0
  %1052 = vmatprep.subr.mxu0 0.0
  %1053 = vmatpush1.xpose.msra.mxu0 0.0
  %1054 = vmatprep.subr.mxu0 0.0
  %1055 = vmatpush1.xpose.msra.mxu0 0.0
  %1056 = vmatprep.subr.mxu0 0.0
  %1057 = vmatpush1.xpose.msra.mxu0 0.0
  %1058 = vmatprep.subr.mxu0 0.0
  %1059 = vmatpush1.xpose.msra.mxu0 0.0
  %1060 = vmatprep.subr.mxu0 0.0
  %1061 = vmatpush1.xpose.msra.mxu0 0.0
  %1062 = vmatprep.subr.mxu0 0.0
  %1063 = vmatpush1.xpose.msra.mxu0 0.0
  %v1064 = vand.u32 %v24, 4294901760
  %v1065 = vsub.f32 %v24, %v1064
  %1066 = vmatprep.subr.mxu0 %v1065
  %v1067 = vand.u32 %v23, 4294901760
  %v1068 = vsub.f32 %v23, %v1067
  %1069 = vmatpush1.xpose.msra.mxu0 %v1068
  %v1070 = vand.u32 %v20, 4294901760
  %v1071 = vsub.f32 %v20, %v1070
  %1072 = vmatprep.subr.mxu0 %v1071
  %v1073 = vand.u32 %v19, 4294901760
  %v1074 = vsub.f32 %v19, %v1073
  %1075 = vmatpush1.xpose.msra.mxu0 %v1074
  %1076 = vmatprep.subr.mxu0 0.0
  %1077 = vmatpush2.xpose.msra.mxu0 0.0
  %1078 = vmatprep.subr.mxu0 0.0
  %1079 = vmatpush2.xpose.msra.mxu0 0.0
  %1080 = vmatprep.subr.mxu0 0.0
  %1081 = vmatpush2.xpose.msra.mxu0 0.0
  %1082 = vmatprep.subr.mxu0 0.0
  %1083 = vmatpush2.xpose.msra.mxu0 0.0
  %1084 = vmatprep.subr.mxu0 0.0
  %1085 = vmatpush2.xpose.msra.mxu0 0.0
  %1086 = vmatprep.subr.mxu0 0.0
  %1087 = vmatpush2.xpose.msra.mxu0 0.0
  %1088 = vmatprep.subr.mxu0 0.0
  %1089 = vmatpush2.xpose.msra.mxu0 0.0
  %1090 = vmatprep.subr.mxu0 0.0
  %1091 = vmatpush2.xpose.msra.mxu0 0.0
  %1092 = vmatprep.subr.mxu0 0.0
  %1093 = vmatpush2.xpose.msra.mxu0 0.0
  %1094 = vmatprep.subr.mxu0 0.0
  %1095 = vmatpush2.xpose.msra.mxu0 0.0
  %1096 = vmatprep.subr.mxu0 0.0
  %1097 = vmatpush2.xpose.msra.mxu0 0.0
  %1098 = vmatprep.subr.mxu0 0.0
  %1099 = vmatpush2.xpose.msra.mxu0 0.0
  %1100 = vmatprep.subr.mxu0 0.0
  %1101 = vmatpush2.xpose.msra.mxu0 0.0
  %1102 = vmatprep.subr.mxu0 0.0
  %1103 = vmatpush2.xpose.msra.mxu0 0.0
  %1104 = vmatprep.subr.mxu0 0.0
  %1105 = vmatpush2.xpose.msra.mxu0 0.0
  %1106 = vmatprep.subr.mxu0 0.0
  %1107 = vmatpush2.xpose.msra.mxu0 0.0
  %v1108 = vand.u32 %v114, 4294901760
  %v1109 = vsub.f32 %v114, %v1108
  %1110 = vmatprep.mubr.f32.mxu0 %v1109
  %v1111 = vand.u32 %v112, 4294901760
  %v1112 = vsub.f32 %v112, %v1111
  %1113 = vmatmul.mubr.f32.gmra.mxu0 %v1112
  %v1114 = vpop.f32.mrf.mxu0
  %v1115 = vadd.f32 %v1026, %v1114
  %v1116 = vpop.f32.mrf.mxu0
  %v1117 = vand.u32 %v118, 4294901760
  %v1118 = vsub.f32 %v118, %v1117
  %1119 = vmatprep.mubr.f32.mxu0 %v1118
  %v1120 = vand.u32 %v117, 4294901760
  %v1121 = vsub.f32 %v117, %v1120
  %1122 = vmatmul.mubr.f32.gmra.mxu0 %v1121
  %v1123 = vpop.f32.mrf.mxu0
  %v1124 = vadd.f32 %v1033, %v1123
  %v1125 = vpop.f32.mrf.mxu0
  %1126 = vdwg.mxu0
  %1127 = vmatprep.subr.mxu0 0.0
  %1128 = vmatpush1.xpose.msra.mxu0 0.0
  %1129 = vmatprep.subr.mxu0 0.0
  %1130 = vmatpush1.xpose.msra.mxu0 0.0
  %1131 = vmatprep.subr.mxu0 0.0
  %1132 = vmatpush1.xpose.msra.mxu0 0.0
  %1133 = vmatprep.subr.mxu0 0.0
  %1134 = vmatpush1.xpose.msra.mxu0 0.0
  %1135 = vmatprep.subr.mxu0 0.0
  %1136 = vmatpush1.xpose.msra.mxu0 0.0
  %1137 = vmatprep.subr.mxu0 0.0
  %1138 = vmatpush1.xpose.msra.mxu0 0.0
  %1139 = vmatprep.subr.mxu0 0.0
  %1140 = vmatpush1.xpose.msra.mxu0 0.0
  %1141 = vmatprep.subr.mxu0 0.0
  %1142 = vmatpush1.xpose.msra.mxu0 0.0
  %1143 = vmatprep.subr.mxu0 0.0
  %1144 = vmatpush1.xpose.msra.mxu0 0.0
  %1145 = vmatprep.subr.mxu0 0.0
  %1146 = vmatpush1.xpose.msra.mxu0 0.0
  %1147 = vmatprep.subr.mxu0 0.0
  %1148 = vmatpush1.xpose.msra.mxu0 0.0
  %1149 = vmatprep.subr.mxu0 0.0
  %1150 = vmatpush1.xpose.msra.mxu0 0.0
  %1151 = vmatprep.subr.mxu0 0.0
  %1152 = vmatpush1.xpose.msra.mxu0 0.0
  %1153 = vmatprep.subr.mxu0 0.0
  %1154 = vmatpush1.xpose.msra.mxu0 0.0
  %v1155 = vand.u32 %v24, 4294901760
  %1156 = vmatprep.subr.mxu0 %v1155
  %v1157 = vand.u32 %v23, 4294901760
  %1158 = vmatpush1.xpose.msra.mxu0 %v1157
  %v1159 = vand.u32 %v20, 4294901760
  %1160 = vmatprep.subr.mxu0 %v1159
  %v1161 = vand.u32 %v19, 4294901760
  %1162 = vmatpush1.xpose.msra.mxu0 %v1161
  %1163 = vmatprep.subr.mxu0 0.0
  %1164 = vmatpush2.xpose.msra.mxu0 0.0
  %1165 = vmatprep.subr.mxu0 0.0
  %1166 = vmatpush2.xpose.msra.mxu0 0.0
  %1167 = vmatprep.subr.mxu0 0.0
  %1168 = vmatpush2.xpose.msra.mxu0 0.0
  %1169 = vmatprep.subr.mxu0 0.0
  %1170 = vmatpush2.xpose.msra.mxu0 0.0
  %1171 = vmatprep.subr.mxu0 0.0
  %1172 = vmatpush2.xpose.msra.mxu0 0.0
  %1173 = vmatprep.subr.mxu0 0.0
  %1174 = vmatpush2.xpose.msra.mxu0 0.0
  %1175 = vmatprep.subr.mxu0 0.0
  %1176 = vmatpush2.xpose.msra.mxu0 0.0
  %1177 = vmatprep.subr.mxu0 0.0
  %1178 = vmatpush2.xpose.msra.mxu0 0.0
  %1179 = vmatprep.subr.mxu0 0.0
  %1180 = vmatpush2.xpose.msra.mxu0 0.0
  %1181 = vmatprep.subr.mxu0 0.0
  %1182 = vmatpush2.xpose.msra.mxu0 0.0
  %1183 = vmatprep.subr.mxu0 0.0
  %1184 = vmatpush2.xpose.msra.mxu0 0.0
  %1185 = vmatprep.subr.mxu0 0.0
  %1186 = vmatpush2.xpose.msra.mxu0 0.0
  %1187 = vmatprep.subr.mxu0 0.0
  %1188 = vmatpush2.xpose.msra.mxu0 0.0
  %1189 = vmatprep.subr.mxu0 0.0
  %1190 = vmatpush2.xpose.msra.mxu0 0.0
  %1191 = vmatprep.subr.mxu0 0.0
  %1192 = vmatpush2.xpose.msra.mxu0 0.0
  %1193 = vmatprep.subr.mxu0 0.0
  %1194 = vmatpush2.xpose.msra.mxu0 0.0
  %v1195 = vand.u32 %v114, 4294901760
  %v1196 = vsub.f32 %v114, %v1195
  %v1197 = vand.u32 %v1196, 4294901760
  %1198 = vmatprep.mubr.f32.mxu0 %v1197
  %v1199 = vand.u32 %v112, 4294901760
  %v1200 = vsub.f32 %v112, %v1199
  %v1201 = vand.u32 %v1200, 4294901760
  %1202 = vmatmul.mubr.f32.gmra.mxu0 %v1201
  %v1203 = vpop.f32.mrf.mxu0
  %v1204 = vadd.f32 %v1115, %v1203
  %v1205 = vpop.f32.mrf.mxu0
  %v1206 = vand.u32 %v118, 4294901760
  %v1207 = vsub.f32 %v118, %v1206
  %v1208 = vand.u32 %v1207, 4294901760
  %1209 = vmatprep.mubr.f32.mxu0 %v1208
  %v1210 = vand.u32 %v117, 4294901760
  %v1211 = vsub.f32 %v117, %v1210
  %v1212 = vand.u32 %v1211, 4294901760
  %1213 = vmatmul.mubr.f32.gmra.mxu0 %v1212
  %v1214 = vpop.f32.mrf.mxu0
  %v1215 = vadd.f32 %v1124, %v1214
  %v1216 = vpop.f32.mrf.mxu0
  %1217 = vdwg.mxu0
  %1218 = vmatprep.subr.mxu0 0.0
  %1219 = vmatpush1.xpose.msra.mxu0 0.0
  %1220 = vmatprep.subr.mxu0 0.0
  %1221 = vmatpush1.xpose.msra.mxu0 0.0
  %1222 = vmatprep.subr.mxu0 0.0
  %1223 = vmatpush1.xpose.msra.mxu0 0.0
  %1224 = vmatprep.subr.mxu0 0.0
  %1225 = vmatpush1.xpose.msra.mxu0 0.0
  %1226 = vmatprep.subr.mxu0 0.0
  %1227 = vmatpush1.xpose.msra.mxu0 0.0
  %1228 = vmatprep.subr.mxu0 0.0
  %1229 = vmatpush1.xpose.msra.mxu0 0.0
  %1230 = vmatprep.subr.mxu0 0.0
  %1231 = vmatpush1.xpose.msra.mxu0 0.0
  %1232 = vmatprep.subr.mxu0 0.0
  %1233 = vmatpush1.xpose.msra.mxu0 0.0
  %1234 = vmatprep.subr.mxu0 0.0
  %1235 = vmatpush1.xpose.msra.mxu0 0.0
  %1236 = vmatprep.subr.mxu0 0.0
  %1237 = vmatpush1.xpose.msra.mxu0 0.0
  %1238 = vmatprep.subr.mxu0 0.0
  %1239 = vmatpush1.xpose.msra.mxu0 0.0
  %1240 = vmatprep.subr.mxu0 0.0
  %1241 = vmatpush1.xpose.msra.mxu0 0.0
  %1242 = vmatprep.subr.mxu0 0.0
  %1243 = vmatpush1.xpose.msra.mxu0 0.0
  %1244 = vmatprep.subr.mxu0 0.0
  %1245 = vmatpush1.xpose.msra.mxu0 0.0
  %v1246 = vand.u32 %v24, 4294901760
  %v1247 = vsub.f32 %v24, %v1246
  %v1248 = vand.u32 %v1247, 4294901760
  %1249 = vmatprep.subr.mxu0 %v1248
  %v1250 = vand.u32 %v23, 4294901760
  %v1251 = vsub.f32 %v23, %v1250
  %v1252 = vand.u32 %v1251, 4294901760
  %1253 = vmatpush1.xpose.msra.mxu0 %v1252
  %v1254 = vand.u32 %v20, 4294901760
  %v1255 = vsub.f32 %v20, %v1254
  %v1256 = vand.u32 %v1255, 4294901760
  %1257 = vmatprep.subr.mxu0 %v1256
  %v1258 = vand.u32 %v19, 4294901760
  %v1259 = vsub.f32 %v19, %v1258
  %v1260 = vand.u32 %v1259, 4294901760
  %1261 = vmatpush1.xpose.msra.mxu0 %v1260
  %1262 = vmatprep.subr.mxu0 0.0
  %1263 = vmatpush2.xpose.msra.mxu0 0.0
  %1264 = vmatprep.subr.mxu0 0.0
  %1265 = vmatpush2.xpose.msra.mxu0 0.0
  %1266 = vmatprep.subr.mxu0 0.0
  %1267 = vmatpush2.xpose.msra.mxu0 0.0
  %1268 = vmatprep.subr.mxu0 0.0
  %1269 = vmatpush2.xpose.msra.mxu0 0.0
  %1270 = vmatprep.subr.mxu0 0.0
  %1271 = vmatpush2.xpose.msra.mxu0 0.0
  %1272 = vmatprep.subr.mxu0 0.0
  %1273 = vmatpush2.xpose.msra.mxu0 0.0
  %1274 = vmatprep.subr.mxu0 0.0
  %1275 = vmatpush2.xpose.msra.mxu0 0.0
  %1276 = vmatprep.subr.mxu0 0.0
  %1277 = vmatpush2.xpose.msra.mxu0 0.0
  %1278 = vmatprep.subr.mxu0 0.0
  %1279 = vmatpush2.xpose.msra.mxu0 0.0
  %1280 = vmatprep.subr.mxu0 0.0
  %1281 = vmatpush2.xpose.msra.mxu0 0.0
  %1282 = vmatprep.subr.mxu0 0.0
  %1283 = vmatpush2.xpose.msra.mxu0 0.0
  %1284 = vmatprep.subr.mxu0 0.0
  %1285 = vmatpush2.xpose.msra.mxu0 0.0
  %1286 = vmatprep.subr.mxu0 0.0
  %1287 = vmatpush2.xpose.msra.mxu0 0.0
  %1288 = vmatprep.subr.mxu0 0.0
  %1289 = vmatpush2.xpose.msra.mxu0 0.0
  %1290 = vmatprep.subr.mxu0 0.0
  %1291 = vmatpush2.xpose.msra.mxu0 0.0
  %1292 = vmatprep.subr.mxu0 0.0
  %1293 = vmatpush2.xpose.msra.mxu0 0.0
  %v1294 = vand.u32 %v114, 4294901760
  %1295 = vmatprep.mubr.f32.mxu0 %v1294
  %v1296 = vand.u32 %v112, 4294901760
  %1297 = vmatmul.mubr.f32.gmra.mxu0 %v1296
  %v1298 = vpop.f32.mrf.mxu0
  %v1299 = vadd.f32 %v1204, %v1298
  %v1300 = vpop.f32.mrf.mxu0
  %v1301 = vand.u32 %v118, 4294901760
  %1302 = vmatprep.mubr.f32.mxu0 %v1301
  %v1303 = vand.u32 %v117, 4294901760
  %1304 = vmatmul.mubr.f32.gmra.mxu0 %v1303
  %v1305 = vpop.f32.mrf.mxu0
  %v1306 = vadd.f32 %v1215, %v1305
  %v1307 = vpop.f32.mrf.mxu0
  %1308 = vdwg.mxu0
  %1309 = vmatprep.subr.mxu0 0.0
  %1310 = vmatpush1.xpose.msra.mxu0 0.0
  %1311 = vmatprep.subr.mxu0 0.0
  %1312 = vmatpush1.xpose.msra.mxu0 0.0
  %1313 = vmatprep.subr.mxu0 0.0
  %1314 = vmatpush1.xpose.msra.mxu0 0.0
  %1315 = vmatprep.subr.mxu0 0.0
  %1316 = vmatpush1.xpose.msra.mxu0 0.0
  %1317 = vmatprep.subr.mxu0 0.0
  %1318 = vmatpush1.xpose.msra.mxu0 0.0
  %1319 = vmatprep.subr.mxu0 0.0
  %1320 = vmatpush1.xpose.msra.mxu0 0.0
  %1321 = vmatprep.subr.mxu0 0.0
  %1322 = vmatpush1.xpose.msra.mxu0 0.0
  %1323 = vmatprep.subr.mxu0 0.0
  %1324 = vmatpush1.xpose.msra.mxu0 0.0
  %1325 = vmatprep.subr.mxu0 0.0
  %1326 = vmatpush1.xpose.msra.mxu0 0.0
  %1327 = vmatprep.subr.mxu0 0.0
  %1328 = vmatpush1.xpose.msra.mxu0 0.0
  %1329 = vmatprep.subr.mxu0 0.0
  %1330 = vmatpush1.xpose.msra.mxu0 0.0
  %1331 = vmatprep.subr.mxu0 0.0
  %1332 = vmatpush1.xpose.msra.mxu0 0.0
  %1333 = vmatprep.subr.mxu0 0.0
  %1334 = vmatpush1.xpose.msra.mxu0 0.0
  %1335 = vmatprep.subr.mxu0 0.0
  %1336 = vmatpush1.xpose.msra.mxu0 0.0
  %v1337 = vand.u32 %v24, 4294901760
  %1338 = vmatprep.subr.mxu0 %v1337
  %v1339 = vand.u32 %v23, 4294901760
  %1340 = vmatpush1.xpose.msra.mxu0 %v1339
  %v1341 = vand.u32 %v20, 4294901760
  %1342 = vmatprep.subr.mxu0 %v1341
  %v1343 = vand.u32 %v19, 4294901760
  %1344 = vmatpush1.xpose.msra.mxu0 %v1343
  %1345 = vmatprep.subr.mxu0 0.0
  %1346 = vmatpush2.xpose.msra.mxu0 0.0
  %1347 = vmatprep.subr.mxu0 0.0
  %1348 = vmatpush2.xpose.msra.mxu0 0.0
  %1349 = vmatprep.subr.mxu0 0.0
  %1350 = vmatpush2.xpose.msra.mxu0 0.0
  %1351 = vmatprep.subr.mxu0 0.0
  %1352 = vmatpush2.xpose.msra.mxu0 0.0
  %1353 = vmatprep.subr.mxu0 0.0
  %1354 = vmatpush2.xpose.msra.mxu0 0.0
  %1355 = vmatprep.subr.mxu0 0.0
  %1356 = vmatpush2.xpose.msra.mxu0 0.0
  %1357 = vmatprep.subr.mxu0 0.0
  %1358 = vmatpush2.xpose.msra.mxu0 0.0
  %1359 = vmatprep.subr.mxu0 0.0
  %1360 = vmatpush2.xpose.msra.mxu0 0.0
  %1361 = vmatprep.subr.mxu0 0.0
  %1362 = vmatpush2.xpose.msra.mxu0 0.0
  %1363 = vmatprep.subr.mxu0 0.0
  %1364 = vmatpush2.xpose.msra.mxu0 0.0
  %1365 = vmatprep.subr.mxu0 0.0
  %1366 = vmatpush2.xpose.msra.mxu0 0.0
  %1367 = vmatprep.subr.mxu0 0.0
  %1368 = vmatpush2.xpose.msra.mxu0 0.0
  %1369 = vmatprep.subr.mxu0 0.0
  %1370 = vmatpush2.xpose.msra.mxu0 0.0
  %1371 = vmatprep.subr.mxu0 0.0
  %1372 = vmatpush2.xpose.msra.mxu0 0.0
  %1373 = vmatprep.subr.mxu0 0.0
  %1374 = vmatpush2.xpose.msra.mxu0 0.0
  %1375 = vmatprep.subr.mxu0 0.0
  %1376 = vmatpush2.xpose.msra.mxu0 0.0
  %v1377 = vand.u32 %v114, 4294901760
  %1378 = vmatprep.mubr.f32.mxu0 %v1377
  %v1379 = vand.u32 %v112, 4294901760
  %1380 = vmatmul.mubr.f32.gmra.mxu0 %v1379
  %v1381 = vpop.f32.mrf.mxu0
  %v1382 = vadd.f32 %v1299, %v1381
  %v1383 = vpop.f32.mrf.mxu0
  %v1384 = vand.u32 %v118, 4294901760
  %1385 = vmatprep.mubr.f32.mxu0 %v1384
  %v1386 = vand.u32 %v117, 4294901760
  %1387 = vmatmul.mubr.f32.gmra.mxu0 %v1386
  %v1388 = vpop.f32.mrf.mxu0
  %v1389 = vadd.f32 %v1306, %v1388
  %v1390 = vpop.f32.mrf.mxu0
  %1391 = vdwg.mxu0
  %v1392 = vmul.f32 %v1382, 0.00390625
  %v1393 = vmul.f32 %v1389, 0.00390625
  %v1394 = vmul.f32 %v1392, %v1392
  %v1395 = vmul.f32 %v1393, %v1393
  %v1396 = vsel %vm741, %v1394, 0.0
  %1397 = vadd.xlane.f32.xlu0 %v1396
  %v1398 = vpop.xlane.xlu0 %1397
  %v1399 = vsel %vm741, %v1395, 0.0
  %1400 = vadd.xlane.f32.xlu0 %v1399
  %v1401 = vpop.xlane.xlu0 %1400
  %v1402 = vrsqrt.pop %v1398
  %v1403 = vmul.f32 %v1398, %v1402
  %vm1404 = vcmp.eq.f32.partialorder %v1398, inf
  %v1405 = vsel %vm1404, %v1398, %v1403
  %vm1406 = vcmp.eq.f32.partialorder %v1398, 0.0
  %v1407 = vand.u32 %v1398, 2147483648
  %v1408 = vsel %vm1406, %v1407, %v1405
  %v1409 = vrsqrt.pop %v1401
  %v1410 = vmul.f32 %v1401, %v1409
  %vm1411 = vcmp.eq.f32.partialorder %v1401, inf
  %v1412 = vsel %vm1411, %v1401, %v1410
  %vm1413 = vcmp.eq.f32.partialorder %v1401, 0.0
  %v1414 = vand.u32 %v1401, 2147483648
  %v1415 = vsel %vm1413, %v1414, %v1412
  %v1416 = vmul.f32 %v1408, %v175
  %v1417 = vmul.f32 %v1408, %v182
  %v1418 = vmul.f32 %v1415, %v175
  %v1419 = vmul.f32 %v1415, %v182
  %v1420 = vadd.f32 %v19, %v1416
  %v1421 = vadd.f32 %v20, %v1417
  %v1422 = vadd.f32 %v23, %v1418
  %v1423 = vadd.f32 %v24, %v1419
  %v1424 = vadd.f32 %v1420, %v1421
  %1425 = vadd.xlane.f32.xlu0 %v1424
  %v1426 = vpop.xlane.xlu0 %1425
  %v1427 = vadd.f32 %v1422, %v1423
  %1428 = vadd.xlane.f32.xlu0 %v1427
  %v1429 = vpop.xlane.xlu0 %1428
  %v1430 = vmul.f32 %v1426, 0.00390625
  %v1431 = vmul.f32 %v1429, 0.00390625
  %v1432 = vmul.f32 %v1420, %v1420
  %v1433 = vmul.f32 %v1421, %v1421
  %v1434 = vmul.f32 %v1422, %v1422
  %v1435 = vmul.f32 %v1423, %v1423
  %v1436 = vadd.f32 %v1432, %v1433
  %1437 = vadd.xlane.f32.xlu0 %v1436
  %v1438 = vpop.xlane.xlu0 %1437
  %v1439 = vadd.f32 %v1434, %v1435
  %1440 = vadd.xlane.f32.xlu0 %v1439
  %v1441 = vpop.xlane.xlu0 %1440
  %v1442 = vmul.f32 %v1438, 0.00390625
  %v1443 = vmul.f32 %v1441, 0.00390625
  %v1444 = vmul.f32 %v1430, %v1430
  %v1445 = vmul.f32 %v1431, %v1431
  %v1446 = vsub.f32 %v1442, %v1444
  %v1447 = vsub.f32 %v1443, %v1445
  %v1448 = vmax.f32 %v1446, 0.0
  %v1449 = vmax.f32 %v1447, 0.0
  %v1450 = vsub.f32 %v1420, %v1430
  %v1451 = vsub.f32 %v1421, %v1430
  %v1452 = vsub.f32 %v1422, %v1431
  %v1453 = vsub.f32 %v1423, %v1431
  %v1454 = vadd.f32 %v1448, 1e-05
  %v1455 = vadd.f32 %v1449, 1e-05
  %v1456 = vrsqrt.pop %v1454
  %v1457 = vrsqrt.pop %v1455
  %v1458 = vmul.f32 %v1450, %v1456
  %v1459 = vmul.f32 %v1451, %v1456
  %v1460 = vmul.f32 %v1452, %v1457
  %v1461 = vmul.f32 %v1453, %v1457
  %v1462 = vmul.f32 %v1458, %v811
  %v1463 = vmul.f32 %v1459, %v811
  %v1464 = vmul.f32 %v1460, %v816
  %v1465 = vmul.f32 %v1461, %v816
  %v1466 = vadd.f32 %v1462, %v824
  %v1467 = vadd.f32 %v1463, %v824
  %v1468 = vadd.f32 %v1464, %v828
  %v1469 = vadd.f32 %v1465, %v828
  %1470 = vst [vmem:[%s4 + $0x10] sm:$0xff] %v1466
  %1471 = vst [vmem:[%s4 + $0x18] sm:$0xff] %v1467
  %1472 = vst [vmem:[%s4 + $0x30] sm:$0xff] %v1468
  %1473 = vst [vmem:[%s4 + $0x38] sm:$0xff] %v1469
  %v1474 = vld [vmem:[%s4] sm:$0xff]
  %v1475 = vld [vmem:[%s4 + $0x8] sm:$0xff]
  %v1476 = vld [vmem:[%s4 + $0x10] sm:$0xff]
  %v1477 = vld [vmem:[%s4 + $0x18] sm:$0xff]
  %v1478 = vld [vmem:[%s4 + $0x20] sm:$0xff]
  %v1479 = vld [vmem:[%s4 + $0x28] sm:$0xff]
  %v1480 = vld [vmem:[%s4 + $0x30] sm:$0xff]
  %v1481 = vld [vmem:[%s4 + $0x38] sm:$0xff]
  %v1482 = vlaneseq
  %v1483 = vand.u32 %v1482, 127
  %v1484 = vadd.s32 %v1483, 128
  %v1485 = vadd.s32 %v1483, 256
  %v1486 = vadd.s32 %v1483, 384
  %vm1487 = vcmp.lt.s32.totalorder %v1483, 0
  %v1488 = vsub.s32 0, %v1483
  %v1489 = vsel %vm1487, %v1488, %v1483
  %v1490 = vshrl.u32 %v1489, 4
  %v1491 = vand.u32 %v1489, 15
  %v1492 = vsub.s32 0, %v1491
  %v1493 = vsel %vm1487, %v1492, %v1491
  %vm1494 = vcmp.lt.s32.totalorder %v1484, 0
  %v1495 = vsub.s32 0, %v1484
  %v1496 = vsel %vm1494, %v1495, %v1484
  %v1497 = vshrl.u32 %v1496, 4
  %v1498 = vand.u32 %v1496, 15
  %v1499 = vsub.s32 0, %v1498
  %v1500 = vsel %vm1494, %v1499, %v1498
  %vm1501 = vcmp.lt.s32.totalorder %v1485, 0
  %v1502 = vsub.s32 0, %v1485
  %v1503 = vsel %vm1501, %v1502, %v1485
  %v1504 = vshrl.u32 %v1503, 4
  %v1505 = vand.u32 %v1503, 15
  %v1506 = vsub.s32 0, %v1505
  %v1507 = vsel %vm1501, %v1506, %v1505
  %vm1508 = vcmp.lt.s32.totalorder %v1486, 0
  %v1509 = vsub.s32 0, %v1486
  %v1510 = vsel %vm1508, %v1509, %v1486
  %v1511 = vshrl.u32 %v1510, 4
  %v1512 = vand.u32 %v1510, 15
  %v1513 = vsub.s32 0, %v1512
  %v1514 = vsel %vm1508, %v1513, %v1512
  %vm1515 = vcmp.ne.s32.totalorder %v1493, 0
  %vm1516 = vcmp.ne.s32.totalorder %v1500, 0
  %vm1517 = vcmp.ne.s32.totalorder %v1507, 0
  %vm1518 = vcmp.ne.s32.totalorder %v1514, 0
  %vm1519 = vcmp.lt.s32.totalorder %v1493, 0
  %vm1520 = vcmp.lt.s32.totalorder %v1500, 0
  %vm1521 = vcmp.lt.s32.totalorder %v1507, 0
  %vm1522 = vcmp.lt.s32.totalorder %v1514, 0
  %vm1523 = vmand %vm1519, %vm1515
  %vm1524 = vmand %vm1520, %vm1516
  %vm1525 = vmand %vm1521, %vm1517
  %vm1526 = vmand %vm1522, %vm1518
  %v1527 = vadd.s32 %v1493, 16
  %v1528 = vadd.s32 %v1500, 16
  %v1529 = vadd.s32 %v1507, 16
  %v1530 = vadd.s32 %v1514, 16
  %v1531 = vsel %vm1523, %v1527, %v1493
  %v1532 = vsel %vm1524, %v1528, %v1500
  %v1533 = vsel %vm1525, %v1529, %v1507
  %v1534 = vsel %vm1526, %v1530, %v1514
  %vm1535 = vcmp.lt.s32.totalorder %v1483, 0
  %v1536 = vsub.s32 0, %v1483
  %v1537 = vsel %vm1535, %v1536, %v1483
  %v1538 = vshrl.u32 %v1537, 8
  %v1539 = vand.u32 %v1537, 255
  %v1540 = vsub.s32 0, %v1539
  %v1541 = vsel %vm1535, %v1540, %v1539
  %vm1542 = vcmp.lt.s32.totalorder %v1484, 0
  %v1543 = vsub.s32 0, %v1484
  %v1544 = vsel %vm1542, %v1543, %v1484
  %v1545 = vshrl.u32 %v1544, 8
  %v1546 = vand.u32 %v1544, 255
  %v1547 = vsub.s32 0, %v1546
  %v1548 = vsel %vm1542, %v1547, %v1546
  %vm1549 = vcmp.lt.s32.totalorder %v1485, 0
  %v1550 = vsub.s32 0, %v1485
  %v1551 = vsel %vm1549, %v1550, %v1485
  %v1552 = vshrl.u32 %v1551, 8
  %v1553 = vand.u32 %v1551, 255
  %v1554 = vsub.s32 0, %v1553
  %v1555 = vsel %vm1549, %v1554, %v1553
  %vm1556 = vcmp.lt.s32.totalorder %v1486, 0
  %v1557 = vsub.s32 0, %v1486
  %v1558 = vsel %vm1556, %v1557, %v1486
  %v1559 = vshrl.u32 %v1558, 8
  %v1560 = vand.u32 %v1558, 255
  %v1561 = vsub.s32 0, %v1560
  %v1562 = vsel %vm1556, %v1561, %v1560
  %vm1563 = vcmp.ne.s32.totalorder %v1541, 0
  %vm1564 = vcmp.ne.s32.totalorder %v1548, 0
  %vm1565 = vcmp.ne.s32.totalorder %v1555, 0
  %vm1566 = vcmp.ne.s32.totalorder %v1562, 0
  %vm1567 = vcmp.lt.s32.totalorder %v1541, 0
  %vm1568 = vcmp.lt.s32.totalorder %v1548, 0
  %vm1569 = vcmp.lt.s32.totalorder %v1555, 0
  %vm1570 = vcmp.lt.s32.totalorder %v1562, 0
  %vm1571 = vmand %vm1567, %vm1563
  %vm1572 = vmand %vm1568, %vm1564
  %vm1573 = vmand %vm1569, %vm1565
  %vm1574 = vmand %vm1570, %vm1566
  %v1575 = vadd.s32 %v1541, 256
  %v1576 = vadd.s32 %v1548, 256
  %v1577 = vadd.s32 %v1555, 256
  %v1578 = vadd.s32 %v1562, 256
  %v1579 = vsel %vm1571, %v1575, %v1541
  %v1580 = vsel %vm1572, %v1576, %v1548
  %v1581 = vsel %vm1573, %v1577, %v1555
  %v1582 = vsel %vm1574, %v1578, %v1562
  %vm1583 = vcmp.ge.s32.totalorder %v1579, 16
  %vm1584 = vcmp.ge.s32.totalorder %v1580, 16
  %vm1585 = vcmp.ge.s32.totalorder %v1581, 16
  %vm1586 = vcmp.ge.s32.totalorder %v1582, 16
  %vm1587 = vcmp.lt.s32.totalorder %v1579, 240
  %vm1588 = vcmp.lt.s32.totalorder %v1580, 240
  %vm1589 = vcmp.lt.s32.totalorder %v1581, 240
  %vm1590 = vcmp.lt.s32.totalorder %v1582, 240
  %vm1591 = vcmp.ge.s32.totalorder %v1531, 1
  %vm1592 = vcmp.ge.s32.totalorder %v1532, 1
  %vm1593 = vcmp.ge.s32.totalorder %v1533, 1
  %vm1594 = vcmp.ge.s32.totalorder %v1534, 1
  %vm1595 = vcmp.lt.s32.totalorder %v1531, 15
  %vm1596 = vcmp.lt.s32.totalorder %v1532, 15
  %vm1597 = vcmp.lt.s32.totalorder %v1533, 15
  %vm1598 = vcmp.lt.s32.totalorder %v1534, 15
  %1599 = vrot.lane.b32.xlu0 %v1474, 17
  %v1600 = vpop.permute.xlu0 %1599
  %1601 = vrot.lane.b32.xlu0 %v1478, 17
  %v1602 = vpop.permute.xlu0 %1601
  %1603 = vrot.lane.b32.xlu0 %v1475, 17
  %v1604 = vpop.permute.xlu0 %1603
  %1605 = vrot.lane.b32.xlu0 %v1479, 17
  %v1606 = vpop.permute.xlu0 %1605
  %1607 = vrot.lane.b32.xlu0 %v1476, 17
  %v1608 = vpop.permute.xlu0 %1607
  %1609 = vrot.lane.b32.xlu0 %v1480, 17
  %v1610 = vpop.permute.xlu0 %1609
  %1611 = vrot.lane.b32.xlu0 %v1477, 17
  %v1612 = vpop.permute.xlu0 %1611
  %1613 = vrot.lane.b32.xlu0 %v1481, 17
  %v1614 = vpop.permute.xlu0 %1613
  %vm1615 = vcmp.lt.s32.totalorder %v1483, 17
  %v1616 = vsel %vm1615, %v1608, %v1612
  %v1617 = vsel %vm1615, %v1610, %v1614
  %v1618 = vsel %vm1615, %v1604, %v1608
  %v1619 = vsel %vm1615, %v1606, %v1610
  %v1620 = vsel %vm1615, %v1600, %v1604
  %v1621 = vsel %vm1615, %v1602, %v1606
  %v1622 = vsel %vm1615, %v1612, %v1600
  %v1623 = vsel %vm1615, %v1614, %v1602
  %vm1624 = vmand %vm1583, %vm1591
  %vm1625 = vmand %vm1584, %vm1592
  %vm1626 = vmand %vm1585, %vm1593
  %vm1627 = vmand %vm1586, %vm1594
  %v1628 = vsel %vm1624, 1, 0
  %v1629 = vsel %vm1625, 1, 0
  %v1630 = vsel %vm1626, 1, 0
  %v1631 = vsel %vm1627, 1, 0
  %vm1632 = vcmp.eq.s32.totalorder %v1628, 1
  %vm1633 = vcmp.eq.s32.totalorder %v1629, 1
  %vm1634 = vcmp.eq.s32.totalorder %v1630, 1
  %vm1635 = vcmp.eq.s32.totalorder %v1631, 1
  %v1636 = vsel %vm1632, %v1622, 0.0
  %v1637 = vsel %vm1633, %v1620, 0.0
  %v1638 = vsel %vm1634, %v1618, 0.0
  %v1639 = vsel %vm1635, %v1616, 0.0
  %v1640 = vsel %vm1632, %v1623, 0.0
  %v1641 = vsel %vm1633, %v1621, 0.0
  %v1642 = vsel %vm1634, %v1619, 0.0
  %v1643 = vsel %vm1635, %v1617, 0.0
  %v1644 = vpack.c.bf16 %v1640, %v1636
  %v1645 = vpack.c.bf16 %v1641, %v1637
  %v1646 = vpack.c.bf16 %v1642, %v1638
  %v1647 = vpack.c.bf16 %v1643, %v1639
  %v1652 = vunpack.c.l.b16 %v1644
  %v1653 = vunpack.c.l.b16 %v1645
  %v1654 = vunpack.c.l.b16 %v1646
  %v1655 = vunpack.c.l.b16 %v1647
  %v1656 = vunpack.c.h.b16 %v1644
  %v1657 = vunpack.c.h.b16 %v1645
  %v1658 = vunpack.c.h.b16 %v1646
  %v1659 = vunpack.c.h.b16 %v1647
  %v1660 = vpack.c.b16 %v1653, %v1652
  %v1661 = vpack.c.b16 %v1655, %v1654
  %v1662 = vpack.c.b16 %v1657, %v1656
  %v1663 = vpack.c.b16 %v1659, %v1658
  %1668 = vst [vmem:[#allocation2] sm:$0xff] %v1660
  %1669 = vst [vmem:[#allocation2 + $0x8] sm:$0xff] %v1661
  %1670 = vst [vmem:[#allocation2 + $0x10] sm:$0xff] %v1662
  %1671 = vst [vmem:[#allocation2 + $0x18] sm:$0xff] %v1663
  %1672 = vrot.lane.b32.xlu0 %v1474, 16
  %v1673 = vpop.permute.xlu0 %1672
  %1674 = vrot.lane.b32.xlu0 %v1478, 16
  %v1675 = vpop.permute.xlu0 %1674
  %1676 = vrot.lane.b32.xlu0 %v1475, 16
  %v1677 = vpop.permute.xlu0 %1676
  %1678 = vrot.lane.b32.xlu0 %v1479, 16
  %v1679 = vpop.permute.xlu0 %1678
  %1680 = vrot.lane.b32.xlu0 %v1476, 16
  %v1681 = vpop.permute.xlu0 %1680
  %1682 = vrot.lane.b32.xlu0 %v1480, 16
  %v1683 = vpop.permute.xlu0 %1682
  %1684 = vrot.lane.b32.xlu0 %v1477, 16
  %v1685 = vpop.permute.xlu0 %1684
  %1686 = vrot.lane.b32.xlu0 %v1481, 16
  %v1687 = vpop.permute.xlu0 %1686
  %vm1688 = vcmp.lt.s32.totalorder %v1483, 16
  %v1689 = vsel %vm1688, %v1681, %v1685
  %v1690 = vsel %vm1688, %v1683, %v1687
  %v1691 = vsel %vm1688, %v1677, %v1681
  %v1692 = vsel %vm1688, %v1679, %v1683
  %v1693 = vsel %vm1688, %v1673, %v1677
  %v1694 = vsel %vm1688, %v1675, %v1679
  %v1695 = vsel %vm1688, %v1685, %v1673
  %v1696 = vsel %vm1688, %v1687, %v1675
  %v1697 = vsel %vm1583, 1, 0
  %v1698 = vsel %vm1584, 1, 0
  %v1699 = vsel %vm1585, 1, 0
  %v1700 = vsel %vm1586, 1, 0
  %vm1701 = vcmp.eq.s32.totalorder %v1697, 1
  %vm1702 = vcmp.eq.s32.totalorder %v1698, 1
  %vm1703 = vcmp.eq.s32.totalorder %v1699, 1
  %vm1704 = vcmp.eq.s32.totalorder %v1700, 1
  %v1705 = vsel %vm1701, %v1695, 0.0
  %v1706 = vsel %vm1702, %v1693, 0.0
  %v1707 = vsel %vm1703, %v1691, 0.0
  %v1708 = vsel %vm1704, %v1689, 0.0
  %v1709 = vsel %vm1701, %v1696, 0.0
  %v1710 = vsel %vm1702, %v1694, 0.0
  %v1711 = vsel %vm1703, %v1692, 0.0
  %v1712 = vsel %vm1704, %v1690, 0.0
  %v1713 = vpack.c.bf16 %v1709, %v1705
  %v1714 = vpack.c.bf16 %v1710, %v1706
  %v1715 = vpack.c.bf16 %v1711, %v1707
  %v1716 = vpack.c.bf16 %v1712, %v1708
  %v1721 = vunpack.c.l.b16 %v1713
  %v1722 = vunpack.c.l.b16 %v1714
  %v1723 = vunpack.c.l.b16 %v1715
  %v1724 = vunpack.c.l.b16 %v1716
  %v1725 = vunpack.c.h.b16 %v1713
  %v1726 = vunpack.c.h.b16 %v1714
  %v1727 = vunpack.c.h.b16 %v1715
  %v1728 = vunpack.c.h.b16 %v1716
  %v1729 = vpack.c.b16 %v1722, %v1721
  %v1730 = vpack.c.b16 %v1724, %v1723
  %v1731 = vpack.c.b16 %v1726, %v1725
  %v1732 = vpack.c.b16 %v1728, %v1727
  %1737 = vst [vmem:[#allocation2 + $0x20] sm:$0xff] %v1729
  %1738 = vst [vmem:[#allocation2 + $0x28] sm:$0xff] %v1730
  %1739 = vst [vmem:[#allocation2 + $0x30] sm:$0xff] %v1731
  %1740 = vst [vmem:[#allocation2 + $0x38] sm:$0xff] %v1732
  %1741 = vrot.lane.b32.xlu0 %v1474, 15
  %v1742 = vpop.permute.xlu0 %1741
  %1743 = vrot.lane.b32.xlu0 %v1478, 15
  %v1744 = vpop.permute.xlu0 %1743
  %1745 = vrot.lane.b32.xlu0 %v1475, 15
  %v1746 = vpop.permute.xlu0 %1745
  %1747 = vrot.lane.b32.xlu0 %v1479, 15
  %v1748 = vpop.permute.xlu0 %1747
  %1749 = vrot.lane.b32.xlu0 %v1476, 15
  %v1750 = vpop.permute.xlu0 %1749
  %1751 = vrot.lane.b32.xlu0 %v1480, 15
  %v1752 = vpop.permute.xlu0 %1751
  %1753 = vrot.lane.b32.xlu0 %v1477, 15
  %v1754 = vpop.permute.xlu0 %1753
  %1755 = vrot.lane.b32.xlu0 %v1481, 15
  %v1756 = vpop.permute.xlu0 %1755
  %vm1757 = vcmp.lt.s32.totalorder %v1483, 15
  %v1758 = vsel %vm1757, %v1750, %v1754
  %v1759 = vsel %vm1757, %v1752, %v1756
  %v1760 = vsel %vm1757, %v1746, %v1750
  %v1761 = vsel %vm1757, %v1748, %v1752
  %v1762 = vsel %vm1757, %v1742, %v1746
  %v1763 = vsel %vm1757, %v1744, %v1748
  %v1764 = vsel %vm1757, %v1754, %v1742
  %v1765 = vsel %vm1757, %v1756, %v1744
  %vm1766 = vmand %vm1583, %vm1595
  %vm1767 = vmand %vm1584, %vm1596
  %vm1768 = vmand %vm1585, %vm1597
  %vm1769 = vmand %vm1586, %vm1598
  %v1770 = vsel %vm1766, 1, 0
  %v1771 = vsel %vm1767, 1, 0
  %v1772 = vsel %vm1768, 1, 0
  %v1773 = vsel %vm1769, 1, 0
  %vm1774 = vcmp.eq.s32.totalorder %v1770, 1
  %vm1775 = vcmp.eq.s32.totalorder %v1771, 1
  %vm1776 = vcmp.eq.s32.totalorder %v1772, 1
  %vm1777 = vcmp.eq.s32.totalorder %v1773, 1
  %v1778 = vsel %vm1774, %v1764, 0.0
  %v1779 = vsel %vm1775, %v1762, 0.0
  %v1780 = vsel %vm1776, %v1760, 0.0
  %v1781 = vsel %vm1777, %v1758, 0.0
  %v1782 = vsel %vm1774, %v1765, 0.0
  %v1783 = vsel %vm1775, %v1763, 0.0
  %v1784 = vsel %vm1776, %v1761, 0.0
  %v1785 = vsel %vm1777, %v1759, 0.0
  %v1786 = vpack.c.bf16 %v1782, %v1778
  %v1787 = vpack.c.bf16 %v1783, %v1779
  %v1788 = vpack.c.bf16 %v1784, %v1780
  %v1789 = vpack.c.bf16 %v1785, %v1781
  %v1794 = vunpack.c.l.b16 %v1786
  %v1795 = vunpack.c.l.b16 %v1787
  %v1796 = vunpack.c.l.b16 %v1788
  %v1797 = vunpack.c.l.b16 %v1789
  %v1798 = vunpack.c.h.b16 %v1786
  %v1799 = vunpack.c.h.b16 %v1787
  %v1800 = vunpack.c.h.b16 %v1788
  %v1801 = vunpack.c.h.b16 %v1789
  %v1802 = vpack.c.b16 %v1795, %v1794
  %v1803 = vpack.c.b16 %v1797, %v1796
  %v1804 = vpack.c.b16 %v1799, %v1798
  %v1805 = vpack.c.b16 %v1801, %v1800
  %1810 = vst [vmem:[#allocation2 + $0x40] sm:$0xff] %v1802
  %1811 = vst [vmem:[#allocation2 + $0x48] sm:$0xff] %v1803
  %1812 = vst [vmem:[#allocation2 + $0x50] sm:$0xff] %v1804
  %1813 = vst [vmem:[#allocation2 + $0x58] sm:$0xff] %v1805
  %1814 = vrot.lane.b32.xlu0 %v1474, 1
  %v1815 = vpop.permute.xlu0 %1814
  %1816 = vrot.lane.b32.xlu0 %v1478, 1
  %v1817 = vpop.permute.xlu0 %1816
  %1818 = vrot.lane.b32.xlu0 %v1475, 1
  %v1819 = vpop.permute.xlu0 %1818
  %1820 = vrot.lane.b32.xlu0 %v1479, 1
  %v1821 = vpop.permute.xlu0 %1820
  %1822 = vrot.lane.b32.xlu0 %v1476, 1
  %v1823 = vpop.permute.xlu0 %1822
  %1824 = vrot.lane.b32.xlu0 %v1480, 1
  %v1825 = vpop.permute.xlu0 %1824
  %1826 = vrot.lane.b32.xlu0 %v1477, 1
  %v1827 = vpop.permute.xlu0 %1826
  %1828 = vrot.lane.b32.xlu0 %v1481, 1
  %v1829 = vpop.permute.xlu0 %1828
  %vm1830 = vcmp.lt.s32.totalorder %v1483, 1
  %v1831 = vsel %vm1830, %v1823, %v1827
  %v1832 = vsel %vm1830, %v1825, %v1829
  %v1833 = vsel %vm1830, %v1819, %v1823
  %v1834 = vsel %vm1830, %v1821, %v1825
  %v1835 = vsel %vm1830, %v1815, %v1819
  %v1836 = vsel %vm1830, %v1817, %v1821
  %v1837 = vsel %vm1830, %v1827, %v1815
  %v1838 = vsel %vm1830, %v1829, %v1817
  %v1839 = vsel %vm1591, 1, 0
  %v1840 = vsel %vm1592, 1, 0
  %v1841 = vsel %vm1593, 1, 0
  %v1842 = vsel %vm1594, 1, 0
  %vm1843 = vcmp.eq.s32.totalorder %v1839, 1
  %vm1844 = vcmp.eq.s32.totalorder %v1840, 1
  %vm1845 = vcmp.eq.s32.totalorder %v1841, 1
  %vm1846 = vcmp.eq.s32.totalorder %v1842, 1
  %v1847 = vsel %vm1843, %v1837, 0.0
  %v1848 = vsel %vm1844, %v1835, 0.0
  %v1849 = vsel %vm1845, %v1833, 0.0
  %v1850 = vsel %vm1846, %v1831, 0.0
  %v1851 = vsel %vm1843, %v1838, 0.0
  %v1852 = vsel %vm1844, %v1836, 0.0
  %v1853 = vsel %vm1845, %v1834, 0.0
  %v1854 = vsel %vm1846, %v1832, 0.0
  %v1855 = vpack.c.bf16 %v1851, %v1847
  %v1856 = vpack.c.bf16 %v1852, %v1848
  %v1857 = vpack.c.bf16 %v1853, %v1849
  %v1858 = vpack.c.bf16 %v1854, %v1850
  %v1863 = vunpack.c.l.b16 %v1855
  %v1864 = vunpack.c.l.b16 %v1856
  %v1865 = vunpack.c.l.b16 %v1857
  %v1866 = vunpack.c.l.b16 %v1858
  %v1867 = vunpack.c.h.b16 %v1855
  %v1868 = vunpack.c.h.b16 %v1856
  %v1869 = vunpack.c.h.b16 %v1857
  %v1870 = vunpack.c.h.b16 %v1858
  %v1871 = vpack.c.b16 %v1864, %v1863
  %v1872 = vpack.c.b16 %v1866, %v1865
  %v1873 = vpack.c.b16 %v1868, %v1867
  %v1874 = vpack.c.b16 %v1870, %v1869
  %1879 = vst [vmem:[#allocation2 + $0x60] sm:$0xff] %v1871
  %1880 = vst [vmem:[#allocation2 + $0x68] sm:$0xff] %v1872
  %1881 = vst [vmem:[#allocation2 + $0x70] sm:$0xff] %v1873
  %1882 = vst [vmem:[#allocation2 + $0x78] sm:$0xff] %v1874
  %v1883 = vpack.c.bf16 %v1478, %v1474
  %v1884 = vpack.c.bf16 %v1479, %v1475
  %v1885 = vpack.c.bf16 %v1480, %v1476
  %v1886 = vpack.c.bf16 %v1481, %v1477
  %v1891 = vunpack.c.l.b16 %v1883
  %v1892 = vunpack.c.l.b16 %v1884
  %v1893 = vunpack.c.l.b16 %v1885
  %v1894 = vunpack.c.l.b16 %v1886
  %v1895 = vunpack.c.h.b16 %v1883
  %v1896 = vunpack.c.h.b16 %v1884
  %v1897 = vunpack.c.h.b16 %v1885
  %v1898 = vunpack.c.h.b16 %v1886
  %v1899 = vpack.c.b16 %v1892, %v1891
  %v1900 = vpack.c.b16 %v1894, %v1893
  %v1901 = vpack.c.b16 %v1896, %v1895
  %v1902 = vpack.c.b16 %v1898, %v1897
  %1907 = vst [vmem:[#allocation2 + $0x80] sm:$0xff] %v1899
  %1908 = vst [vmem:[#allocation2 + $0x88] sm:$0xff] %v1900
  %1909 = vst [vmem:[#allocation2 + $0x90] sm:$0xff] %v1901
  %1910 = vst [vmem:[#allocation2 + $0x98] sm:$0xff] %v1902
  %1911 = vrot.lane.b32.xlu0 %v1474, 127
  %v1912 = vpop.permute.xlu0 %1911
  %1913 = vrot.lane.b32.xlu0 %v1478, 127
  %v1914 = vpop.permute.xlu0 %1913
  %1915 = vrot.lane.b32.xlu0 %v1475, 127
  %v1916 = vpop.permute.xlu0 %1915
  %1917 = vrot.lane.b32.xlu0 %v1479, 127
  %v1918 = vpop.permute.xlu0 %1917
  %1919 = vrot.lane.b32.xlu0 %v1476, 127
  %v1920 = vpop.permute.xlu0 %1919
  %1921 = vrot.lane.b32.xlu0 %v1480, 127
  %v1922 = vpop.permute.xlu0 %1921
  %1923 = vrot.lane.b32.xlu0 %v1477, 127
  %v1924 = vpop.permute.xlu0 %1923
  %1925 = vrot.lane.b32.xlu0 %v1481, 127
  %v1926 = vpop.permute.xlu0 %1925
  %vm1927 = vcmp.lt.s32.totalorder %v1483, 127
  %v1928 = vsel %vm1927, %v1920, %v1924
  %v1929 = vsel %vm1927, %v1922, %v1926
  %v1930 = vsel %vm1927, %v1916, %v1920
  %v1931 = vsel %vm1927, %v1918, %v1922
  %v1932 = vsel %vm1927, %v1912, %v1916
  %v1933 = vsel %vm1927, %v1914, %v1918
  %v1934 = vsel %vm1927, %v1924, %v1912
  %v1935 = vsel %vm1927, %v1926, %v1914
  %v1936 = vsel %vm1595, 1, 0
  %v1937 = vsel %vm1596, 1, 0
  %v1938 = vsel %vm1597, 1, 0
  %v1939 = vsel %vm1598, 1, 0
  %vm1940 = vcmp.eq.s32.totalorder %v1936, 1
  %vm1941 = vcmp.eq.s32.totalorder %v1937, 1
  %vm1942 = vcmp.eq.s32.totalorder %v1938, 1
  %vm1943 = vcmp.eq.s32.totalorder %v1939, 1
  %v1944 = vsel %vm1940, %v1932, 0.0
  %v1945 = vsel %vm1941, %v1930, 0.0
  %v1946 = vsel %vm1942, %v1928, 0.0
  %v1947 = vsel %vm1943, %v1934, 0.0
  %v1948 = vsel %vm1940, %v1933, 0.0
  %v1949 = vsel %vm1941, %v1931, 0.0
  %v1950 = vsel %vm1942, %v1929, 0.0
  %v1951 = vsel %vm1943, %v1935, 0.0
  %v1952 = vpack.c.bf16 %v1948, %v1944
  %v1953 = vpack.c.bf16 %v1949, %v1945
  %v1954 = vpack.c.bf16 %v1950, %v1946
  %v1955 = vpack.c.bf16 %v1951, %v1947
  %v1960 = vunpack.c.l.b16 %v1952
  %v1961 = vunpack.c.l.b16 %v1953
  %v1962 = vunpack.c.l.b16 %v1954
  %v1963 = vunpack.c.l.b16 %v1955
  %v1964 = vunpack.c.h.b16 %v1952
  %v1965 = vunpack.c.h.b16 %v1953
  %v1966 = vunpack.c.h.b16 %v1954
  %v1967 = vunpack.c.h.b16 %v1955
  %v1968 = vpack.c.b16 %v1961, %v1960
  %v1969 = vpack.c.b16 %v1963, %v1962
  %v1970 = vpack.c.b16 %v1965, %v1964
  %v1971 = vpack.c.b16 %v1967, %v1966
  %1976 = vst [vmem:[#allocation2 + $0xa0] sm:$0xff] %v1968
  %1977 = vst [vmem:[#allocation2 + $0xa8] sm:$0xff] %v1969
  %1978 = vst [vmem:[#allocation2 + $0xb0] sm:$0xff] %v1970
  %1979 = vst [vmem:[#allocation2 + $0xb8] sm:$0xff] %v1971
  %1980 = vrot.lane.b32.xlu0 %v1474, 113
  %v1981 = vpop.permute.xlu0 %1980
  %1982 = vrot.lane.b32.xlu0 %v1478, 113
  %v1983 = vpop.permute.xlu0 %1982
  %1984 = vrot.lane.b32.xlu0 %v1475, 113
  %v1985 = vpop.permute.xlu0 %1984
  %1986 = vrot.lane.b32.xlu0 %v1479, 113
  %v1987 = vpop.permute.xlu0 %1986
  %1988 = vrot.lane.b32.xlu0 %v1476, 113
  %v1989 = vpop.permute.xlu0 %1988
  %1990 = vrot.lane.b32.xlu0 %v1480, 113
  %v1991 = vpop.permute.xlu0 %1990
  %1992 = vrot.lane.b32.xlu0 %v1477, 113
  %v1993 = vpop.permute.xlu0 %1992
  %1994 = vrot.lane.b32.xlu0 %v1481, 113
  %v1995 = vpop.permute.xlu0 %1994
  %vm1996 = vcmp.lt.s32.totalorder %v1483, 113
  %v1997 = vsel %vm1996, %v1989, %v1993
  %v1998 = vsel %vm1996, %v1991, %v1995
  %v1999 = vsel %vm1996, %v1985, %v1989
  %v2000 = vsel %vm1996, %v1987, %v1991
  %v2001 = vsel %vm1996, %v1981, %v1985
  %v2002 = vsel %vm1996, %v1983, %v1987
  %v2003 = vsel %vm1996, %v1993, %v1981
  %v2004 = vsel %vm1996, %v1995, %v1983
  %vm2005 = vmand %vm1587, %vm1591
  %vm2006 = vmand %vm1588, %vm1592
  %vm2007 = vmand %vm1589, %vm1593
  %vm2008 = vmand %vm1590, %vm1594
  %v2009 = vsel %vm2005, 1, 0
  %v2010 = vsel %vm2006, 1, 0
  %v2011 = vsel %vm2007, 1, 0
  %v2012 = vsel %vm2008, 1, 0
  %vm2013 = vcmp.eq.s32.totalorder %v2009, 1
  %vm2014 = vcmp.eq.s32.totalorder %v2010, 1
  %vm2015 = vcmp.eq.s32.totalorder %v2011, 1
  %vm2016 = vcmp.eq.s32.totalorder %v2012, 1
  %v2017 = vsel %vm2013, %v2001, 0.0
  %v2018 = vsel %vm2014, %v1999, 0.0
  %v2019 = vsel %vm2015, %v1997, 0.0
  %v2020 = vsel %vm2016, %v2003, 0.0
  %v2021 = vsel %vm2013, %v2002, 0.0
  %v2022 = vsel %vm2014, %v2000, 0.0
  %v2023 = vsel %vm2015, %v1998, 0.0
  %v2024 = vsel %vm2016, %v2004, 0.0
  %v2025 = vpack.c.bf16 %v2021, %v2017
  %v2026 = vpack.c.bf16 %v2022, %v2018
  %v2027 = vpack.c.bf16 %v2023, %v2019
  %v2028 = vpack.c.bf16 %v2024, %v2020
  %v2033 = vunpack.c.l.b16 %v2025
  %v2034 = vunpack.c.l.b16 %v2026
  %v2035 = vunpack.c.l.b16 %v2027
  %v2036 = vunpack.c.l.b16 %v2028
  %v2037 = vunpack.c.h.b16 %v2025
  %v2038 = vunpack.c.h.b16 %v2026
  %v2039 = vunpack.c.h.b16 %v2027
  %v2040 = vunpack.c.h.b16 %v2028
  %v2041 = vpack.c.b16 %v2034, %v2033
  %v2042 = vpack.c.b16 %v2036, %v2035
  %v2043 = vpack.c.b16 %v2038, %v2037
  %v2044 = vpack.c.b16 %v2040, %v2039
  %2049 = vst [vmem:[#allocation2 + $0xc0] sm:$0xff] %v2041
  %2050 = vst [vmem:[#allocation2 + $0xc8] sm:$0xff] %v2042
  %2051 = vst [vmem:[#allocation2 + $0xd0] sm:$0xff] %v2043
  %2052 = vst [vmem:[#allocation2 + $0xd8] sm:$0xff] %v2044
  %2053 = vrot.lane.b32.xlu0 %v1474, 112
  %v2054 = vpop.permute.xlu0 %2053
  %2055 = vrot.lane.b32.xlu0 %v1478, 112
  %v2056 = vpop.permute.xlu0 %2055
  %2057 = vrot.lane.b32.xlu0 %v1475, 112
  %v2058 = vpop.permute.xlu0 %2057
  %2059 = vrot.lane.b32.xlu0 %v1479, 112
  %v2060 = vpop.permute.xlu0 %2059
  %2061 = vrot.lane.b32.xlu0 %v1476, 112
  %v2062 = vpop.permute.xlu0 %2061
  %2063 = vrot.lane.b32.xlu0 %v1480, 112
  %v2064 = vpop.permute.xlu0 %2063
  %2065 = vrot.lane.b32.xlu0 %v1477, 112
  %v2066 = vpop.permute.xlu0 %2065
  %2067 = vrot.lane.b32.xlu0 %v1481, 112
  %v2068 = vpop.permute.xlu0 %2067
  %vm2069 = vcmp.lt.s32.totalorder %v1483, 112
  %v2070 = vsel %vm2069, %v2062, %v2066
  %v2071 = vsel %vm2069, %v2064, %v2068
  %v2072 = vsel %vm2069, %v2058, %v2062
  %v2073 = vsel %vm2069, %v2060, %v2064
  %v2074 = vsel %vm2069, %v2054, %v2058
  %v2075 = vsel %vm2069, %v2056, %v2060
  %v2076 = vsel %vm2069, %v2066, %v2054
  %v2077 = vsel %vm2069, %v2068, %v2056
  %v2078 = vsel %vm1587, 1, 0
  %v2079 = vsel %vm1588, 1, 0
  %v2080 = vsel %vm1589, 1, 0
  %v2081 = vsel %vm1590, 1, 0
  %vm2082 = vcmp.eq.s32.totalorder %v2078, 1
  %vm2083 = vcmp.eq.s32.totalorder %v2079, 1
  %vm2084 = vcmp.eq.s32.totalorder %v2080, 1
  %vm2085 = vcmp.eq.s32.totalorder %v2081, 1
  %v2086 = vsel %vm2082, %v2074, 0.0
  %v2087 = vsel %vm2083, %v2072, 0.0
  %v2088 = vsel %vm2084, %v2070, 0.0
  %v2089 = vsel %vm2085, %v2076, 0.0
  %v2090 = vsel %vm2082, %v2075, 0.0
  %v2091 = vsel %vm2083, %v2073, 0.0
  %v2092 = vsel %vm2084, %v2071, 0.0
  %v2093 = vsel %vm2085, %v2077, 0.0
  %v2094 = vpack.c.bf16 %v2090, %v2086
  %v2095 = vpack.c.bf16 %v2091, %v2087
  %v2096 = vpack.c.bf16 %v2092, %v2088
  %v2097 = vpack.c.bf16 %v2093, %v2089
  %v2102 = vunpack.c.l.b16 %v2094
  %v2103 = vunpack.c.l.b16 %v2095
  %v2104 = vunpack.c.l.b16 %v2096
  %v2105 = vunpack.c.l.b16 %v2097
  %v2106 = vunpack.c.h.b16 %v2094
  %v2107 = vunpack.c.h.b16 %v2095
  %v2108 = vunpack.c.h.b16 %v2096
  %v2109 = vunpack.c.h.b16 %v2097
  %v2110 = vpack.c.b16 %v2103, %v2102
  %v2111 = vpack.c.b16 %v2105, %v2104
  %v2112 = vpack.c.b16 %v2107, %v2106
  %v2113 = vpack.c.b16 %v2109, %v2108
  %2118 = vst [vmem:[#allocation2 + $0xe0] sm:$0xff] %v2110
  %2119 = vst [vmem:[#allocation2 + $0xe8] sm:$0xff] %v2111
  %2120 = vst [vmem:[#allocation2 + $0xf0] sm:$0xff] %v2112
  %2121 = vst [vmem:[#allocation2 + $0xf8] sm:$0xff] %v2113
  %2122 = vrot.lane.b32.xlu0 %v1474, 111
  %v2123 = vpop.permute.xlu0 %2122
  %2124 = vrot.lane.b32.xlu0 %v1478, 111
  %v2125 = vpop.permute.xlu0 %2124
  %2126 = vrot.lane.b32.xlu0 %v1475, 111
  %v2127 = vpop.permute.xlu0 %2126
  %2128 = vrot.lane.b32.xlu0 %v1479, 111
  %v2129 = vpop.permute.xlu0 %2128
  %2130 = vrot.lane.b32.xlu0 %v1476, 111
  %v2131 = vpop.permute.xlu0 %2130
  %2132 = vrot.lane.b32.xlu0 %v1480, 111
  %v2133 = vpop.permute.xlu0 %2132
  %2134 = vrot.lane.b32.xlu0 %v1477, 111
  %v2135 = vpop.permute.xlu0 %2134
  %2136 = vrot.lane.b32.xlu0 %v1481, 111
  %v2137 = vpop.permute.xlu0 %2136
  %vm2138 = vcmp.lt.s32.totalorder %v1483, 111
  %v2139 = vsel %vm2138, %v2131, %v2135
  %v2140 = vsel %vm2138, %v2133, %v2137
  %v2141 = vsel %vm2138, %v2127, %v2131
  %v2142 = vsel %vm2138, %v2129, %v2133
  %v2143 = vsel %vm2138, %v2123, %v2127
  %v2144 = vsel %vm2138, %v2125, %v2129
  %v2145 = vsel %vm2138, %v2135, %v2123
  %v2146 = vsel %vm2138, %v2137, %v2125
  %vm2147 = vmand %vm1587, %vm1595
  %vm2148 = vmand %vm1588, %vm1596
  %vm2149 = vmand %vm1589, %vm1597
  %vm2150 = vmand %vm1590, %vm1598
  %v2151 = vsel %vm2147, 1, 0
  %v2152 = vsel %vm2148, 1, 0
  %v2153 = vsel %vm2149, 1, 0
  %v2154 = vsel %vm2150, 1, 0
  %vm2155 = vcmp.eq.s32.totalorder %v2151, 1
  %vm2156 = vcmp.eq.s32.totalorder %v2152, 1
  %vm2157 = vcmp.eq.s32.totalorder %v2153, 1
  %vm2158 = vcmp.eq.s32.totalorder %v2154, 1
  %v2159 = vsel %vm2155, %v2143, 0.0
  %v2160 = vsel %vm2156, %v2141, 0.0
  %v2161 = vsel %vm2157, %v2139, 0.0
  %v2162 = vsel %vm2158, %v2145, 0.0
  %v2163 = vsel %vm2155, %v2144, 0.0
  %v2164 = vsel %vm2156, %v2142, 0.0
  %v2165 = vsel %vm2157, %v2140, 0.0
  %v2166 = vsel %vm2158, %v2146, 0.0
  %v2167 = vpack.c.bf16 %v2163, %v2159
  %v2168 = vpack.c.bf16 %v2164, %v2160
  %v2169 = vpack.c.bf16 %v2165, %v2161
  %v2170 = vpack.c.bf16 %v2166, %v2162
  %v2175 = vunpack.c.l.b16 %v2167
  %v2176 = vunpack.c.l.b16 %v2168
  %v2177 = vunpack.c.l.b16 %v2169
  %v2178 = vunpack.c.l.b16 %v2170
  %v2179 = vunpack.c.h.b16 %v2167
  %v2180 = vunpack.c.h.b16 %v2168
  %v2181 = vunpack.c.h.b16 %v2169
  %v2182 = vunpack.c.h.b16 %v2170
  %v2183 = vpack.c.b16 %v2176, %v2175
  %v2184 = vpack.c.b16 %v2178, %v2177
  %v2185 = vpack.c.b16 %v2180, %v2179
  %v2186 = vpack.c.b16 %v2182, %v2181
  %2191 = vst [vmem:[#allocation2 + $0x100] sm:$0xff] %v2183
  %2192 = vst [vmem:[#allocation2 + $0x108] sm:$0xff] %v2184
  %2193 = vst [vmem:[#allocation2 + $0x110] sm:$0xff] %v2185
  %2194 = vst [vmem:[#allocation2 + $0x118] sm:$0xff] %v2186
  %v2195 = vld [vmem:[%s2] sm:$0xff]
  %v2196 = vld [vmem:[#allocation2] sm:$0xff]
  %v2197 = vld [vmem:[#allocation2 + $0x8] sm:$0xff]
  %v2198 = vld [vmem:[#allocation2 + $0x10] sm:$0xff]
  %v2199 = vld [vmem:[#allocation2 + $0x18] sm:$0xff]
  %v2200 = vld [vmem:[#allocation2 + $0x20] sm:$0xff]
  %v2201 = vld [vmem:[#allocation2 + $0x28] sm:$0xff]
  %v2202 = vld [vmem:[#allocation2 + $0x30] sm:$0xff]
  %v2203 = vld [vmem:[#allocation2 + $0x38] sm:$0xff]
  %v2204 = vld [vmem:[#allocation2 + $0x40] sm:$0xff]
  %v2205 = vld [vmem:[#allocation2 + $0x48] sm:$0xff]
  %v2206 = vld [vmem:[#allocation2 + $0x50] sm:$0xff]
  %v2207 = vld [vmem:[#allocation2 + $0x58] sm:$0xff]
  %v2208 = vld [vmem:[#allocation2 + $0x60] sm:$0xff]
  %v2209 = vld [vmem:[#allocation2 + $0x68] sm:$0xff]
  %v2210 = vld [vmem:[#allocation2 + $0x70] sm:$0xff]
  %v2211 = vld [vmem:[#allocation2 + $0x78] sm:$0xff]
  %v2212 = vld [vmem:[#allocation2 + $0x80] sm:$0xff]
  %v2213 = vld [vmem:[#allocation2 + $0x88] sm:$0xff]
  %v2214 = vld [vmem:[#allocation2 + $0x90] sm:$0xff]
  %v2215 = vld [vmem:[#allocation2 + $0x98] sm:$0xff]
  %v2216 = vld [vmem:[#allocation2 + $0xa0] sm:$0xff]
  %v2217 = vld [vmem:[#allocation2 + $0xa8] sm:$0xff]
  %v2218 = vld [vmem:[#allocation2 + $0xb0] sm:$0xff]
  %v2219 = vld [vmem:[#allocation2 + $0xb8] sm:$0xff]
  %v2220 = vld [vmem:[#allocation2 + $0xc0] sm:$0xff]
  %v2221 = vld [vmem:[#allocation2 + $0xc8] sm:$0xff]
  %v2222 = vld [vmem:[#allocation2 + $0xd0] sm:$0xff]
  %v2223 = vld [vmem:[#allocation2 + $0xd8] sm:$0xff]
  %v2224 = vld [vmem:[#allocation2 + $0xe0] sm:$0xff]
  %v2225 = vld [vmem:[#allocation2 + $0xe8] sm:$0xff]
  %v2226 = vld [vmem:[#allocation2 + $0xf0] sm:$0xff]
  %v2227 = vld [vmem:[#allocation2 + $0xf8] sm:$0xff]
  %v2228 = vld [vmem:[#allocation2 + $0x100] sm:$0xff]
  %v2229 = vld [vmem:[#allocation2 + $0x108] sm:$0xff]
  %v2230 = vld [vmem:[#allocation2 + $0x110] sm:$0xff]
  %v2231 = vld [vmem:[#allocation2 + $0x118] sm:$0xff]
  %2232 = vset.pattern.permute.xlu0 2
  %2233 = vperm.xlu0 %2232, %v25
  %v2234 = vpop.permute.xlu0 %2233
  %v2237 = vunpack.c.l.b16 %v2195
  %v2238 = vunpack.c.h.b16 %v2195
  %v2239 = vpack.c.b16 %v2237, %v2237
  %v2240 = vpack.c.b16 %v2238, %v2238
  %v2278 = vunpack.c.l.b16 %v2196
  %v2279 = vunpack.c.h.b16 %v2196
  %v2280 = vunpack.c.l.b16 %v2197
  %v2281 = vunpack.c.h.b16 %v2197
  %v2282 = vunpack.c.l.b16 %v2198
  %v2283 = vunpack.c.h.b16 %v2198
  %v2284 = vunpack.c.l.b16 %v2199
  %v2285 = vunpack.c.h.b16 %v2199
  %v2286 = vunpack.c.l.b16 %v2200
  %v2287 = vunpack.c.h.b16 %v2200
  %v2288 = vunpack.c.l.b16 %v2201
  %v2289 = vunpack.c.h.b16 %v2201
  %v2290 = vunpack.c.l.b16 %v2202
  %v2291 = vunpack.c.h.b16 %v2202
  %v2292 = vunpack.c.l.b16 %v2203
  %v2293 = vunpack.c.h.b16 %v2203
  %v2294 = vunpack.c.l.b16 %v2204
  %v2295 = vunpack.c.h.b16 %v2204
  %v2296 = vunpack.c.l.b16 %v2205
  %v2297 = vunpack.c.h.b16 %v2205
  %v2298 = vunpack.c.l.b16 %v2206
  %v2299 = vunpack.c.h.b16 %v2206
  %v2300 = vunpack.c.l.b16 %v2207
  %v2301 = vunpack.c.h.b16 %v2207
  %v2302 = vunpack.c.l.b16 %v2208
  %v2303 = vunpack.c.h.b16 %v2208
  %v2304 = vunpack.c.l.b16 %v2209
  %v2305 = vunpack.c.h.b16 %v2209
  %v2306 = vunpack.c.l.b16 %v2210
  %v2307 = vunpack.c.h.b16 %v2210
  %v2308 = vunpack.c.l.b16 %v2211
  %v2309 = vunpack.c.h.b16 %v2211
  %v2310 = vunpack.c.l.b16 %v2212
  %v2311 = vunpack.c.h.b16 %v2212
  %v2312 = vunpack.c.l.b16 %v2213
  %v2313 = vunpack.c.h.b16 %v2213
  %v2314 = vunpack.c.l.b16 %v2214
  %v2315 = vunpack.c.h.b16 %v2214
  %v2316 = vunpack.c.l.b16 %v2215
  %v2317 = vunpack.c.h.b16 %v2215
  %v2318 = vunpack.c.l.b16 %v2216
  %v2319 = vunpack.c.h.b16 %v2216
  %v2320 = vunpack.c.l.b16 %v2217
  %v2321 = vunpack.c.h.b16 %v2217
  %v2322 = vunpack.c.l.b16 %v2218
  %v2323 = vunpack.c.h.b16 %v2218
  %v2324 = vunpack.c.l.b16 %v2219
  %v2325 = vunpack.c.h.b16 %v2219
  %v2326 = vunpack.c.l.b16 %v2220
  %v2327 = vunpack.c.h.b16 %v2220
  %v2328 = vunpack.c.l.b16 %v2221
  %v2329 = vunpack.c.h.b16 %v2221
  %v2330 = vunpack.c.l.b16 %v2222
  %v2331 = vunpack.c.h.b16 %v2222
  %v2332 = vunpack.c.l.b16 %v2223
  %v2333 = vunpack.c.h.b16 %v2223
  %v2334 = vunpack.c.l.b16 %v2224
  %v2335 = vunpack.c.h.b16 %v2224
  %v2336 = vunpack.c.l.b16 %v2225
  %v2337 = vunpack.c.h.b16 %v2225
  %v2338 = vunpack.c.l.b16 %v2226
  %v2339 = vunpack.c.h.b16 %v2226
  %v2340 = vunpack.c.l.b16 %v2227
  %v2341 = vunpack.c.h.b16 %v2227
  %v2342 = vunpack.c.l.b16 %v2228
  %v2343 = vunpack.c.h.b16 %v2228
  %v2344 = vunpack.c.l.b16 %v2229
  %v2345 = vunpack.c.h.b16 %v2229
  %v2346 = vunpack.c.l.b16 %v2230
  %v2347 = vunpack.c.h.b16 %v2230
  %v2348 = vunpack.c.l.b16 %v2231
  %v2349 = vunpack.c.h.b16 %v2231
  %v2350 = vpack.c.b16 %v2282, %v2278
  %v2351 = vpack.c.b16 %v2283, %v2279
  %v2352 = vpack.c.b16 %v2284, %v2280
  %v2353 = vpack.c.b16 %v2285, %v2281
  %v2354 = vpack.c.b16 %v2290, %v2286
  %v2355 = vpack.c.b16 %v2291, %v2287
  %v2356 = vpack.c.b16 %v2292, %v2288
  %v2357 = vpack.c.b16 %v2293, %v2289
  %v2358 = vpack.c.b16 %v2298, %v2294
  %v2359 = vpack.c.b16 %v2299, %v2295
  %v2360 = vpack.c.b16 %v2300, %v2296
  %v2361 = vpack.c.b16 %v2301, %v2297
  %v2362 = vpack.c.b16 %v2306, %v2302
  %v2363 = vpack.c.b16 %v2307, %v2303
  %v2364 = vpack.c.b16 %v2308, %v2304
  %v2365 = vpack.c.b16 %v2309, %v2305
  %v2366 = vpack.c.b16 %v2314, %v2310
  %v2367 = vpack.c.b16 %v2315, %v2311
  %v2368 = vpack.c.b16 %v2316, %v2312
  %v2369 = vpack.c.b16 %v2317, %v2313
  %v2370 = vpack.c.b16 %v2322, %v2318
  %v2371 = vpack.c.b16 %v2323, %v2319
  %v2372 = vpack.c.b16 %v2324, %v2320
  %v2373 = vpack.c.b16 %v2325, %v2321
  %v2374 = vpack.c.b16 %v2330, %v2326
  %v2375 = vpack.c.b16 %v2331, %v2327
  %v2376 = vpack.c.b16 %v2332, %v2328
  %v2377 = vpack.c.b16 %v2333, %v2329
  %v2378 = vpack.c.b16 %v2338, %v2334
  %v2379 = vpack.c.b16 %v2339, %v2335
  %v2380 = vpack.c.b16 %v2340, %v2336
  %v2381 = vpack.c.b16 %v2341, %v2337
  %v2382 = vpack.c.b16 %v2346, %v2342
  %v2383 = vpack.c.b16 %v2347, %v2343
  %v2384 = vpack.c.b16 %v2348, %v2344
  %v2385 = vpack.c.b16 %v2349, %v2345
  %v2423 = vsel %vm741, %v2240, 0
  %2425 = vmatprep.subr.bf16.mxu0 %v2379
  %2426 = vmatpush1.bf16.msra.mxu0 %v2378
  %2427 = vmatprep.subr.bf16.mxu0 %v2375
  %2428 = vmatpush1.bf16.msra.mxu0 %v2374
  %2429 = vmatprep.subr.bf16.mxu0 %v2371
  %2430 = vmatpush1.bf16.msra.mxu0 %v2370
  %2431 = vmatprep.subr.bf16.mxu0 %v2367
  %2432 = vmatpush1.bf16.msra.mxu0 %v2366
  %2433 = vmatprep.subr.bf16.mxu0 %v2363
  %2434 = vmatpush1.bf16.msra.mxu0 %v2362
  %2435 = vmatprep.subr.bf16.mxu0 %v2359
  %2436 = vmatpush1.bf16.msra.mxu0 %v2358
  %2437 = vmatprep.subr.bf16.mxu0 %v2355
  %2438 = vmatpush1.bf16.msra.mxu0 %v2354
  %2439 = vmatprep.subr.bf16.mxu0 %v2351
  %2440 = vmatpush1.bf16.msra.mxu0 %v2350
  %2441 = vmatprep.subr.bf16.mxu0 0
  %2442 = vmatpush2.bf16.msra.mxu0 0
  %2443 = vmatprep.subr.bf16.mxu0 0
  %2444 = vmatpush2.bf16.msra.mxu0 0
  %2445 = vmatprep.subr.bf16.mxu0 0
  %2446 = vmatpush2.bf16.msra.mxu0 0
  %2447 = vmatprep.subr.bf16.mxu0 0
  %2448 = vmatpush2.bf16.msra.mxu0 0
  %2449 = vmatprep.subr.bf16.mxu0 0
  %2450 = vmatpush2.bf16.msra.mxu0 0
  %2451 = vmatprep.subr.bf16.mxu0 0
  %2452 = vmatpush2.bf16.msra.mxu0 0
  %2453 = vmatprep.subr.bf16.mxu0 0
  %2454 = vmatpush2.bf16.msra.mxu0 0
  %2455 = vmatprep.subr.bf16.mxu0 %v2383
  %2456 = vmatpush2.bf16.msra.mxu0 %v2382
  %2457 = vmatprep.mubr.bf16.mxu0 %v2423
  %2458 = vmatmul.mubr.bf16.gmra.mxu0 %v2239
  %v2459 = vpop.f32.mrf.mxu0
  %v2460 = vadd.f32 %v2234, %v2459
  %v2461 = vpop.f32.mrf.mxu0
  %v2462 = vadd.f32 %v2234, %v2461
  %v2463 = vpop.f32.mrf.mxu0
  %v2464 = vpop.f32.mrf.mxu0
  %2465 = vdwg.mxu0
  %2466 = vmatprep.subr.bf16.mxu0 %v2381
  %2467 = vmatpush1.bf16.msra.mxu0 %v2380
  %2468 = vmatprep.subr.bf16.mxu0 %v2377
  %2469 = vmatpush1.bf16.msra.mxu0 %v2376
  %2470 = vmatprep.subr.bf16.mxu0 %v2373
  %2471 = vmatpush1.bf16.msra.mxu0 %v2372
  %2472 = vmatprep.subr.bf16.mxu0 %v2369
  %2473 = vmatpush1.bf16.msra.mxu0 %v2368
  %2474 = vmatprep.subr.bf16.mxu0 %v2365
  %2475 = vmatpush1.bf16.msra.mxu0 %v2364
  %2476 = vmatprep.subr.bf16.mxu0 %v2361
  %2477 = vmatpush1.bf16.msra.mxu0 %v2360
  %2478 = vmatprep.subr.bf16.mxu0 %v2357
  %2479 = vmatpush1.bf16.msra.mxu0 %v2356
  %2480 = vmatprep.subr.bf16.mxu0 %v2353
  %2481 = vmatpush1.bf16.msra.mxu0 %v2352
  %2482 = vmatprep.subr.bf16.mxu0 0
  %2483 = vmatpush2.bf16.msra.mxu0 0
  %2484 = vmatprep.subr.bf16.mxu0 0
  %2485 = vmatpush2.bf16.msra.mxu0 0
  %2486 = vmatprep.subr.bf16.mxu0 0
  %2487 = vmatpush2.bf16.msra.mxu0 0
  %2488 = vmatprep.subr.bf16.mxu0 0
  %2489 = vmatpush2.bf16.msra.mxu0 0
  %2490 = vmatprep.subr.bf16.mxu0 0
  %2491 = vmatpush2.bf16.msra.mxu0 0
  %2492 = vmatprep.subr.bf16.mxu0 0
  %2493 = vmatpush2.bf16.msra.mxu0 0
  %2494 = vmatprep.subr.bf16.mxu0 0
  %2495 = vmatpush2.bf16.msra.mxu0 0
  %2496 = vmatprep.subr.bf16.mxu0 %v2385
  %2497 = vmatpush2.bf16.msra.mxu0 %v2384
  %2498 = vmatprep.mubr.bf16.mxu0 %v2423
  %2499 = vmatmul.mubr.bf16.gmra.mxu0 %v2239
  %v2500 = vpop.f32.mrf.mxu0
  %v2501 = vadd.f32 %v2234, %v2500
  %v2502 = vpop.f32.mrf.mxu0
  %v2503 = vadd.f32 %v2234, %v2502
  %v2504 = vpop.f32.mrf.mxu0
  %v2505 = vpop.f32.mrf.mxu0
  %2506 = vdwg.mxu0
  %v2507 = vtanh.pop %v2460
  %v2508 = vtanh.pop %v2462
  %v2509 = vtanh.pop %v2501
  %v2510 = vtanh.pop %v2503
  %2511 = vst [vmem:[%s3] sm:$0xff] %v2507
  %2512 = vst [vmem:[%s3 + $0x8] sm:$0xff] %v2508
  %2513 = vst [vmem:[%s3 + $0x10] sm:$0xff] %v2509
  %2514 = vst [vmem:[%s3 + $0x18] sm:$0xff] %v2510
  // Predicated region
  $region14: #{spatial_self_correlation_forward.1} parent=0 // pred_check
    _
  $region15: #{spatial_self_correlation_forward.1} parent=0 // pred_check_branch
    %2516 = sbr.rel (0) target = $region17
  $region16: #{spatial_self_correlation_forward.1} parent=0 // pred_region
    _
  $region17: #{spatial_self_correlation_forward.1} parent=0 // pred_fallthru
    _
  // Predicated region
  $region18: #{spatial_self_correlation_forward.1} parent=0 // pred_check
    _
  $region19: #{spatial_self_correlation_forward.1} parent=0 // pred_check_branch
    %2518 = sbr.rel (0) target = $region21
  $region20: #{spatial_self_correlation_forward.1} parent=0 // pred_region
    _
  $region21: #{spatial_self_correlation_forward.1} parent=0 // pred_fallthru
    _
  // Predicated region
  $region22: #{spatial_self_correlation_forward.1} parent=0 // pred_check
    _
  $region23: #{spatial_self_correlation_forward.1} parent=0 // pred_check_branch
    %2520 = sbr.rel (0) target = $region25
  $region24: #{spatial_self_correlation_forward.1} parent=0 // pred_region
    _
  $region25: #{spatial_self_correlation_forward.1} parent=0 // pred_fallthru
    _
  // Predicated region
  $region26: #{spatial_self_correlation_forward.1} parent=0 // pred_check
    _
  $region27: #{spatial_self_correlation_forward.1} parent=0 // pred_check_branch
    %2522 = sbr.rel (0) target = $region29
  $region28: #{spatial_self_correlation_forward.1} parent=0 // pred_region
    _
  $region29: #{spatial_self_correlation_forward.1} parent=0 // pred_fallthru
    _

</llo_original>
